<compile_context>
chip_gen: v6e
topology: v6e:2x2x1
jax: 0.10.0
libtpu: 0.0.40
codegen_flags: <defaults>
</compile_context>

<pallas_src>
import jax
import jax.numpy as jnp
from jax.experimental import pallas as pl
from jax.experimental.pallas import tpu as pltpu


# ----------------------------------------------------------------------------
# Kernel 1: conv_1 as im2col matmul + bias + ReLU, tiled over M
# ----------------------------------------------------------------------------
def _conv1_matmul_kernel(p_ref, w_ref, b_ref, o_ref):
    # p: [TM, K], w: [K, 32], b: [1, 32]  ->  relu(p @ w + b)
    acc = jnp.dot(p_ref[...], w_ref[...], preferred_element_type=jnp.float32)
    o_ref[...] = jnp.maximum(acc + b_ref[...], 0.0)


def conv1_matmul(p1, w1m, b1, *, tm):
    M, K = p1.shape
    N = w1m.shape[1]
    assert M % tm == 0, (M, tm)
    return pl.pallas_call(
        _conv1_matmul_kernel,
        out_shape=jax.ShapeDtypeStruct((M, N), jnp.float32),
        grid=(M // tm,),
        in_specs=[
            pl.BlockSpec((tm, K), lambda i: (i, 0)),
            pl.BlockSpec((K, N), lambda i: (0, 0)),
            pl.BlockSpec((1, N), lambda i: (0, 0)),
        ],
        out_specs=pl.BlockSpec((tm, N), lambda i: (i, 0)),
        compiler_params=pltpu.CompilerParams(
            dimension_semantics=("parallel",)),
    )(p1, w1m, b1.reshape(1, N))


# ----------------------------------------------------------------------------
# Kernel 2: fused conv_2 (OC=1) + linear_1 + ReLU + linear_2 + softmax
# ----------------------------------------------------------------------------
def _conv2_head_kernel(p2_ref, w2_ref, b2_ref, wl1_ref, bl1_ref,
                       wl2_ref, bl2_ref, o_ref):
    # p2:  [B, 9, 9, 512]  im2col of the NHWC conv_1 output, cols ordered (kh, kw, c)
    # w2:  [1, 512]        conv_2 weight in matching (kh, kw, c) order
    # b2:  [1]   (SMEM)    conv_2 bias (OC == 1)
    # wl1: [1, 9]          linear_1 weight;  bl1: [1] (SMEM)
    # wl2: [9, nA]         linear_2 weight pre-transposed;  bl2: [1, nA]
    p2 = p2_ref[...]
    w2 = w2_ref[...]                                                   # [1, 512]

    # conv_2: OC == 1 -> VPU multiply + lane reduction (no N=1 MXU matmul)
    y2 = jnp.sum(p2 * w2[None, None, :, :], axis=-1) + b2_ref[0]       # [B, 9, 9]
    y2 = jnp.maximum(y2, 0.0)                                          # relu(conv_2)

    # linear_1 over last axis + ReLU, then squeeze(2): [B, 9, 9] -> [B, 9]
    h = jnp.sum(y2 * wl1_ref[...][None, :, :], axis=-1) + bl1_ref[0]   # [B, 9]
    h = jnp.maximum(h, 0.0)

    # linear_2 + softmax(dim=1)
    logits = jnp.dot(h, wl2_ref[...],
                     preferred_element_type=jnp.float32) + bl2_ref[...]  # [B, nA]
    m = jnp.max(logits, axis=-1, keepdims=True)
    e = jnp.exp(logits - m)
    o_ref[...] = e / jnp.sum(e, axis=-1, keepdims=True)


def conv2_head(p2, w2_flat, b2, wl1, bl1, wl2_t, bl2):
    B, _, _, K = p2.shape
    nA = wl2_t.shape[1]
    return pl.pallas_call(
        _conv2_head_kernel,
        out_shape=jax.ShapeDtypeStruct((B, nA), jnp.float32),
        grid=(1,),
        in_specs=[
            pl.BlockSpec((B, 9, 9, K), lambda i: (0, 0, 0, 0)),
            pl.BlockSpec((1, K), lambda i: (0, 0)),
            pl.BlockSpec(memory_space=pltpu.MemorySpace.SMEM),   # b2 scalar
            pl.BlockSpec((1, 9), lambda i: (0, 0)),
            pl.BlockSpec(memory_space=pltpu.MemorySpace.SMEM),   # bl1 scalar
            pl.BlockSpec((9, nA), lambda i: (0, 0)),
            pl.BlockSpec((1, nA), lambda i: (0, 0)),
        ],
        out_specs=pl.BlockSpec((B, nA), lambda i: (0, 0)),
    )(p2, w2_flat, b2, wl1, bl1, wl2_t, bl2.reshape(1, nA))


# ----------------------------------------------------------------------------
# im2col glue (pure JAX data rearrangement; all FLOPs happen in the kernels)
# ----------------------------------------------------------------------------
def im2col_nchw(x, kh, kw, stride):
    # x: [B, C, H, W] -> [B*OH*OW, C*kh*kw]; cols ordered (c, i, j) to match
    # torch weight.reshape(OC, C*kh*kw); rows ordered (b, oh, ow) so the matmul
    # output reshapes to NHWC without a transpose.
    B, C, H, W = x.shape
    OH = (H - kh) // stride + 1
    OW = (W - kw) // stride + 1
    cols = []
    for i in range(kh):
        for j in range(kw):
            patch = jax.lax.slice(
                x, (0, 0, i, j),
                (B, C, i + stride * (OH - 1) + 1, j + stride * (OW - 1) + 1),
                (1, 1, stride, stride))                       # [B, C, OH, OW]
            cols.append(patch)
    p = jnp.stack(cols, axis=0)                               # [kh*kw, B, C, OH, OW]
    p = p.transpose(1, 3, 4, 2, 0)                            # [B, OH, OW, C, kh*kw]
    return p.reshape(B * OH * OW, C * kh * kw), OH, OW


def im2col_nhwc(y, kh, kw, stride):
    # y: [B, H, W, C] -> [B, OH, OW, kh*kw*C]; cols ordered (i, j, c) (channel-last),
    # consuming NHWC directly — no transpose needed after the stack.
    B, H, W, C = y.shape
    OH = (H - kh) // stride + 1
    OW = (W - kw) // stride + 1
    cols = []
    for i in range(kh):
        for j in range(kw):
            patch = jax.lax.slice(
                y, (0, i, j, 0),
                (B, i + stride * (OH - 1) + 1, j + stride * (OW - 1) + 1, C),
                (1, stride, stride, 1))                       # [B, OH, OW, C]
            cols.append(patch)
    p = jnp.stack(cols, axis=3)                               # [B, OH, OW, kh*kw, C]
    return p.reshape(B, OH, OW, kh * kw * C), OH, OW


# ----------------------------------------------------------------------------
# Full forward pass (DQN.forward)
# ----------------------------------------------------------------------------
@jax.jit
def dqn_forward(x, params):
    B = x.shape[0]

    # conv_1 (k=8, s=4) + ReLU   -> NHWC [B, 20, 20, 32]
    p1, oh1, ow1 = im2col_nchw(x, 8, 8, 4)                    # [B*400, C*64]
    w1m = params["w1"].reshape(32, -1).T                      # [C*64, 32]
    y1 = conv1_matmul(p1, w1m, params["b1"], tm=400)          # [B*400, 32]
    y1 = y1.reshape(B, oh1, ow1, 32)                          # NHWC, no transpose

    # conv_2 (k=4, s=2, OC=1) + ReLU + linear_1 + ReLU + linear_2 + softmax
    p2, _, _ = im2col_nhwc(y1, 4, 4, 2)                       # [B, 9, 9, 512]
    w2_flat = params["w2"].transpose(0, 2, 3, 1).reshape(1, -1)   # (kh, kw, c) order
    return conv2_head(p2, w2_flat, params["b2"], params["wl1"],
                      params["bl1"], params["wl2"].T, params["bl2"])


# ----------------------------------------------------------------------------
# Reference (plain JAX) for correctness check
# ----------------------------------------------------------------------------
def reference(x, params):
    dn = ("NCHW", "OIHW", "NCHW")
    y = jax.lax.conv_general_dilated(x, params["w1"], (4, 4), "VALID", dimension_numbers=dn)
    y = jax.nn.relu(y + params["b1"][None, :, None, None])
    y = jax.lax.conv_general_dilated(y, params["w2"], (2, 2), "VALID", dimension_numbers=dn)
    y = jax.nn.relu(y + params["b2"][None, :, None, None])
    y = y[:, 0]                                               # squeeze(1) -> [B, 9, 9]
    h = jax.nn.relu(y @ params["wl1"].T + params["bl1"])      # [B, 9, 1]
    h = h[:, :, 0]                                            # squeeze(2) -> [B, 9]
    logits = h @ params["wl2"].T + params["bl2"]
    return jax.nn.softmax(logits, axis=1)


def init_params(key, t_step, n_actions):
    def uniform(k, shape, fan_in):
        bound = 1.0 / jnp.sqrt(jnp.float32(fan_in))
        return jax.random.uniform(k, shape, jnp.float32, -bound, bound)

    ks = jax.random.split(key, 8)
    return {
        "w1": uniform(ks[0], (32, t_step, 8, 8), t_step * 8 * 8),
        "b1": uniform(ks[1], (32,), t_step * 8 * 8),
        "w2": uniform(ks[2], (1, 32, 4, 4), 32 * 4 * 4),
        "b2": uniform(ks[3], (1,), 32 * 4 * 4),
        "wl1": uniform(ks[4], (1, 9), 9),
        "bl1": uniform(ks[5], (1,), 9),
        "wl2": uniform(ks[6], (n_actions, 9), 9),
        "bl2": uniform(ks[7], (n_actions,), 9),
    }


if __name__ == "__main__":
    B, T_STEP, N_ACTIONS = 2, 4, 4
    H = W = 84  # Linear(9, .) in the module forces a 9x9 conv output -> 84x84 input

    root = jax.random.PRNGKey(0)
    kx, kp = jax.random.split(root)
    x = jax.random.normal(kx, (B, T_STEP, H, W), jnp.float32)
    params = init_params(kp, T_STEP, N_ACTIONS)

    out = dqn_forward(x, params)
    out = jax.block_until_ready(out)

    ref = reference(x, params)
    assert out.shape == (B, N_ACTIONS), out.shape
    assert jnp.allclose(jnp.sum(out, axis=1), 1.0, atol=1e-5), "softmax rows must sum to 1"
    assert jnp.allclose(out, ref, atol=1e-4, rtol=1e-4), "mismatch vs JAX reference"

    print("KERNEL_OK")
</pallas_src>

<mosaic_0001>
module attributes {stable_mosaic.version = 11 : i64} {
  func.func @_conv1_matmul_kernel(%arg0: i32, %arg1: memref<400x256xf32, #tpu.memory_space<vmem>>, %arg2: memref<256x32xf32, #tpu.memory_space<vmem>>, %arg3: memref<1x32xf32, #tpu.memory_space<vmem>>, %arg4: memref<400x32xf32, #tpu.memory_space<vmem>>) attributes {dimension_semantics = [#tpu.dimension_semantics<parallel>], iteration_bounds = array<i64: 2>, scalar_prefetch = 0 : i64, scratch_operands = 0 : i64, tpu.core_type = #tpu.core_type<tc>, window_params = [{transform_indices = @transform_0, window_bounds = array<i64: 400, 256>}, {pipeline_mode = #tpu.pipeline_mode<synchronous>, transform_indices = @transform_1, window_bounds = array<i64: 256, 32>}, {pipeline_mode = #tpu.pipeline_mode<synchronous>, transform_indices = @transform_2, window_bounds = array<i64: 1, 32>}, {transform_indices = @transform_3, window_bounds = array<i64: 400, 32>}]} {
    %c0 = arith.constant 0 : index
    %c0_0 = arith.constant 0 : index
    %0 = vector.load %arg1[%c0, %c0_0] : memref<400x256xf32, #tpu.memory_space<vmem>>, vector<400x256xf32>
    %c0_1 = arith.constant 0 : index
    %c0_2 = arith.constant 0 : index
    %1 = vector.load %arg2[%c0_1, %c0_2] : memref<256x32xf32, #tpu.memory_space<vmem>>, vector<256x32xf32>
    %cst = arith.constant dense<0.000000e+00> : vector<400x32xf32>
    %2 = tpu.matmul %0, %1, %cst {dimension_numbers = #tpu.dot_dimension_numbers<[1], [0], [0], [1], [0, 0, 1, 1], [], []>} : vector<400x256xf32>, vector<256x32xf32>, vector<400x32xf32> -> vector<400x32xf32>
    %c0_3 = arith.constant 0 : index
    %c0_4 = arith.constant 0 : index
    %3 = vector.load %arg3[%c0_3, %c0_4] : memref<1x32xf32, #tpu.memory_space<vmem>>, vector<1x32xf32>
    %4 = vector.broadcast %3 : vector<1x32xf32> to vector<400x32xf32>
    %5 = arith.addf %2, %4 : vector<400x32xf32>
    %cst_5 = arith.constant 0.000000e+00 : f32
    %6 = vector.broadcast %cst_5 : f32 to vector<400x32xf32>
    %7 = arith.maximumf %5, %6 : vector<400x32xf32>
    %c0_6 = arith.constant 0 : index
    %c0_7 = arith.constant 0 : index
    %8 = vector.load %arg4[%c0_6, %c0_7] : memref<400x32xf32, #tpu.memory_space<vmem>>, vector<400x32xf32>
    tpu.vector_store %arg4[%c0_6, %c0_7], %7 {strides = array<i32>} : memref<400x32xf32, #tpu.memory_space<vmem>>, vector<400x32xf32>,
    return
  }
  func.func @transform_0(%arg0: i32) -> (i32, i32) {
    %c0_i32 = arith.constant 0 : i32
    %c0_i32_0 = arith.constant 0 : i32
    return %arg0, %c0_i32 : i32, i32
  }
  func.func @transform_1(%arg0: i32) -> (i32, i32) {
    %c0_i32 = arith.constant 0 : i32
    %c0_i32_0 = arith.constant 0 : i32
    %c0_i32_1 = arith.constant 0 : i32
    return %c0_i32, %c0_i32_0 : i32, i32
  }
  func.func @transform_2(%arg0: i32) -> (i32, i32) {
    %c0_i32 = arith.constant 0 : i32
    %c0_i32_0 = arith.constant 0 : i32
    %c0_i32_1 = arith.constant 0 : i32
    return %c0_i32, %c0_i32_0 : i32, i32
  }
  func.func @transform_3(%arg0: i32) -> (i32, i32) {
    %c0_i32 = arith.constant 0 : i32
    %c0_i32_0 = arith.constant 0 : i32
    return %arg0, %c0_i32 : i32, i32
  }
}

module attributes {stable_mosaic.version = 11 : i64} {
  func.func @_conv2_head_kernel(%arg0: i32, %arg1: memref<2x9x9x512xf32, #tpu.memory_space<vmem>>, %arg2: memref<1x512xf32, #tpu.memory_space<vmem>>, %arg3: memref<1xf32, #tpu.memory_space<smem>>, %arg4: memref<1x9xf32, #tpu.memory_space<vmem>>, %arg5: memref<1xf32, #tpu.memory_space<smem>>, %arg6: memref<9x4xf32, #tpu.memory_space<vmem>>, %arg7: memref<1x4xf32, #tpu.memory_space<vmem>>, %arg8: memref<2x4xf32, #tpu.memory_space<vmem>>) attributes {dimension_semantics = [#tpu.dimension_semantics<arbitrary>], iteration_bounds = array<i64: 1>, scalar_prefetch = 0 : i64, scratch_operands = 0 : i64, tpu.core_type = #tpu.core_type<tc>, window_params = [{pipeline_mode = #tpu.pipeline_mode<synchronous>, transform_indices = @transform_0, window_bounds = array<i64: 2, 9, 9, 512>}, {pipeline_mode = #tpu.pipeline_mode<synchronous>, transform_indices = @transform_1, window_bounds = array<i64: 1, 512>}, {transform_indices = @transform_2, window_bounds = array<i64: 1>}, {pipeline_mode = #tpu.pipeline_mode<synchronous>, transform_indices = @transform_3, window_bounds = array<i64: 1, 9>}, {transform_indices = @transform_4, window_bounds = array<i64: 1>}, {pipeline_mode = #tpu.pipeline_mode<synchronous>, transform_indices = @transform_5, window_bounds = array<i64: 9, 4>}, {pipeline_mode = #tpu.pipeline_mode<synchronous>, transform_indices = @transform_6, window_bounds = array<i64: 1, 4>}, {pipeline_mode = #tpu.pipeline_mode<synchronous>, transform_indices = @transform_7, window_bounds = array<i64: 2, 4>}]} {
    %c0 = arith.constant 0 : index
    %c0_0 = arith.constant 0 : index
    %c0_1 = arith.constant 0 : index
    %c0_2 = arith.constant 0 : index
    %0 = vector.load %arg1[%c0, %c0_0, %c0_1, %c0_2] : memref<2x9x9x512xf32, #tpu.memory_space<vmem>>, vector<2x9x9x512xf32>
    %c0_3 = arith.constant 0 : index
    %c0_4 = arith.constant 0 : index
    %1 = vector.load %arg2[%c0_3, %c0_4] : memref<1x512xf32, #tpu.memory_space<vmem>>, vector<1x512xf32>
    %2 = vector.shape_cast %1 : vector<1x512xf32> to vector<1x1x1x512xf32>
    %3 = vector.broadcast %2 : vector<1x1x1x512xf32> to vector<2x9x9x512xf32>
    %4 = arith.mulf %0, %3 : vector<2x9x9x512xf32>
    %cst = arith.constant dense<0.000000e+00> : vector<2x9x9xf32>
    %5 = vector.multi_reduction <add>, %4, %cst [3] : vector<2x9x9x512xf32> to vector<2x9x9xf32>
    %c0_5 = arith.constant 0 : index
    %6 = memref.load %arg3[%c0_5] : memref<1xf32, #tpu.memory_space<smem>>
    %7 = vector.broadcast %6 : f32 to vector<2x9x9xf32>
    %8 = arith.addf %5, %7 : vector<2x9x9xf32>
    %cst_6 = arith.constant 0.000000e+00 : f32
    %9 = vector.broadcast %cst_6 : f32 to vector<2x9x9xf32>
    %10 = arith.maximumf %8, %9 : vector<2x9x9xf32>
    %c0_7 = arith.constant 0 : index
    %c0_8 = arith.constant 0 : index
    %11 = vector.load %arg4[%c0_7, %c0_8] : memref<1x9xf32, #tpu.memory_space<vmem>>, vector<1x9xf32>
    %12 = vector.shape_cast %11 : vector<1x9xf32> to vector<1x1x9xf32>
    %13 = vector.broadcast %12 : vector<1x1x9xf32> to vector<2x9x9xf32>
    %14 = arith.mulf %10, %13 : vector<2x9x9xf32>
    %cst_9 = arith.constant dense<0.000000e+00> : vector<2x9xf32>
    %15 = vector.multi_reduction <add>, %14, %cst_9 [2] : vector<2x9x9xf32> to vector<2x9xf32>
    %c0_10 = arith.constant 0 : index
    %16 = memref.load %arg5[%c0_10] : memref<1xf32, #tpu.memory_space<smem>>
    %17 = vector.broadcast %16 : f32 to vector<2x9xf32>
    %18 = arith.addf %15, %17 : vector<2x9xf32>
    %cst_11 = arith.constant 0.000000e+00 : f32
    %19 = vector.broadcast %cst_11 : f32 to vector<2x9xf32>
    %20 = arith.maximumf %18, %19 : vector<2x9xf32>
    %c0_12 = arith.constant 0 : index
    %c0_13 = arith.constant 0 : index
    %21 = vector.load %arg6[%c0_12, %c0_13] : memref<9x4xf32, #tpu.memory_space<vmem>>, vector<9x4xf32>
    %cst_14 = arith.constant dense<0.000000e+00> : vector<2x4xf32>
    %22 = tpu.matmul %20, %21, %cst_14 {dimension_numbers = #tpu.dot_dimension_numbers<[1], [0], [0], [1], [0, 0, 1, 1], [], []>} : vector<2x9xf32>, vector<9x4xf32>, vector<2x4xf32> -> vector<2x4xf32>
    %c0_15 = arith.constant 0 : index
    %c0_16 = arith.constant 0 : index
    %23 = vector.load %arg7[%c0_15, %c0_16] : memref<1x4xf32, #tpu.memory_space<vmem>>, vector<1x4xf32>
    %24 = vector.broadcast %23 : vector<1x4xf32> to vector<2x4xf32>
    %25 = arith.addf %22, %24 : vector<2x4xf32>
    %cst_17 = arith.constant dense<0xFF800000> : vector<2xf32>
    %26 = vector.multi_reduction <maximumf>, %25, %cst_17 [1] : vector<2x4xf32> to vector<2xf32>
    %27 = vector.shape_cast %26 : vector<2xf32> to vector<2x1xf32>
    %28 = vector.broadcast %27 : vector<2x1xf32> to vector<2x4xf32>
    %29 = arith.subf %25, %28 : vector<2x4xf32>
    %30 = math.exp %29 : vector<2x4xf32>
    %cst_18 = arith.constant dense<0.000000e+00> : vector<2xf32>
    %31 = vector.multi_reduction <add>, %30, %cst_18 [1] : vector<2x4xf32> to vector<2xf32>
    %32 = vector.shape_cast %31 : vector<2xf32> to vector<2x1xf32>
    %33 = vector.broadcast %32 : vector<2x1xf32> to vector<2x4xf32>
    %34 = arith.divf %30, %33 : vector<2x4xf32>
    %c0_19 = arith.constant 0 : index
    %c0_20 = arith.constant 0 : index
    %35 = vector.load %arg8[%c0_19, %c0_20] : memref<2x4xf32, #tpu.memory_space<vmem>>, vector<2x4xf32>
    tpu.vector_store %arg8[%c0_19, %c0_20], %34 {strides = array<i32>} : memref<2x4xf32, #tpu.memory_space<vmem>>, vector<2x4xf32>,
    return
  }
  func.func @transform_0(%arg0: i32) -> (i32, i32, i32, i32) {
    %c0_i32 = arith.constant 0 : i32
    %c0_i32_0 = arith.constant 0 : i32
    %c0_i32_1 = arith.constant 0 : i32
    %c0_i32_2 = arith.constant 0 : i32
    %c0_i32_3 = arith.constant 0 : i32
    return %c0_i32, %c0_i32_0, %c0_i32_1, %c0_i32_2 : i32, i32, i32, i32
  }
  func.func @transform_1(%arg0: i32) -> (i32, i32) {
    %c0_i32 = arith.constant 0 : i32
    %c0_i32_0 = arith.constant 0 : i32
    %c0_i32_1 = arith.constant 0 : i32
    return %c0_i32, %c0_i32_0 : i32, i32
  }
  func.func @transform_2(%arg0: i32) -> i32 {
    %c0_i32 = arith.constant 0 : i32
    %c0_i32_0 = arith.constant 0 : i32
    return %c0_i32 : i32
  }
  func.func @transform_3(%arg0: i32) -> (i32, i32) {
    %c0_i32 = arith.constant 0 : i32
    %c0_i32_0 = arith.constant 0 : i32
    %c0_i32_1 = arith.constant 0 : i32
    return %c0_i32, %c0_i32_0 : i32, i32
  }
  func.func @transform_4(%arg0: i32) -> i32 {
    %c0_i32 = arith.constant 0 : i32
    %c0_i32_0 = arith.constant 0 : i32
    return %c0_i32 : i32
  }
  func.func @transform_5(%arg0: i32) -> (i32, i32) {
    %c0_i32 = arith.constant 0 : i32
    %c0_i32_0 = arith.constant 0 : i32
    %c0_i32_1 = arith.constant 0 : i32
    return %c0_i32, %c0_i32_0 : i32, i32
  }
  func.func @transform_6(%arg0: i32) -> (i32, i32) {
    %c0_i32 = arith.constant 0 : i32
    %c0_i32_0 = arith.constant 0 : i32
    %c0_i32_1 = arith.constant 0 : i32
    return %c0_i32, %c0_i32_0 : i32, i32
  }
  func.func @transform_7(%arg0: i32) -> (i32, i32) {
    %c0_i32 = arith.constant 0 : i32
    %c0_i32_0 = arith.constant 0 : i32
    %c0_i32_1 = arith.constant 0 : i32
    return %c0_i32, %c0_i32_0 : i32, i32
  }
}

</mosaic_0001>

<llo_original>
// kernel: dqn_forward.2
$region0: #{dqn_forward.2}
  #allocation0 [shape = 'u32[]', space=smem, size = 0x4, offset = 0x4, fixed_abs, tag = 'smem constant byte address 0x4 - core index']
  #allocation1 [shape = 'u32[144,128]{1,0:T(1,128)}', space=vmem, size = 0x12000, scoped, tag = 'internal scratch']
  %s0 = inlined_call_operand.vmem [shape: f32[800,256], index: 0, kind: input, shape index: {}]
  %s1 = inlined_call_operand.vmem [shape: f32[256,32], index: 1, kind: input, shape index: {}]
  %s2 = inlined_call_operand.vmem [shape: f32[1,32], index: 2, kind: input, shape index: {}]
  %s3 = inlined_call_operand.vmem [shape: f32[800,32], index: 3, kind: output, shape index: {}]
  %s4 = sld [smem:[#allocation0]]
  $region45: #{dqn_forward.2} parent=0
    _
  %s6 = ssub.s32 1, %s4
  %s7 = scalar_select 0, %s6, %s4
  loop: start=0, step=1, limit=4
  $region2: #{dqn_forward.2} parent=0 // loop_pre_header
    _
  $region3: #{dqn_forward.2} parent=0 // loop_header
    %s9 = sphi 0, %s13
    %p10 = scmp.ge.s32.totalorder %s9, 4
    %s19 = sphi 0, %s21
    %s22 = sphi 0, %s19
    %s23 = sphi 0, %s22
    %s39 = sphi 0, %s23
    %s43 = sphi 0, %s43
    %s45 = sphi 0, %s43
    %s46 = sphi 0, %s45
    %s60 = sphi 0, %s46
    %s64 = sphi 0, %s64
    %s66 = sphi 0, %s64
    %s67 = sphi 0, %s66
    %s81 = sphi 0, %s67
    %s87 = sphi 0, %s89
    %s90 = sphi 0, %s87
    %s91 = sphi 0, %s90
    %s107 = sphi 0, %s91
  $region4: #{dqn_forward.2} parent=0 // loop_header_branch
    %12 = sbr.rel (%p10) target = $region8
  $region5: #{dqn_forward.2} parent=0 // loop_body
    %s14 = ssub.s32 %s9, 1
    %s15 = ssub.s32 %s9, 2
    %s16 = sadd.s32 %s9, 1
    %s17 = ssub.s32 %s9, %s16
    %p18 = scmp.eq.s32.totalorder %s17, 0
    %s20 = sadd.s32 %s19, 1
    %s21 = scalar_select %p18, %s19, %s20
    %p24 = pneg %p18
    %p25 = scmp.eq.s32.totalorder %s9, 1
    %p26 = por %p24, %p25
    %p27 = scmp.ne.s32.totalorder %s19, %s22
    %p28 = scmp.eq.s32.totalorder %s9, 0
    %p29 = por %p27, %p28
    %p30 = scmp.ne.s32.totalorder %s19, %s22
    %p31 = scmp.eq.s32.totalorder %s14, 1
    %p32 = por %p30, %p31
    %p33 = scmp.ne.s32.totalorder %s22, %s23
    %p34 = scmp.eq.s32.totalorder %s14, 0
    %p35 = por %p33, %p34
    %p36 = scmp.ne.s32.totalorder %s22, %s23
    %p37 = scmp.eq.s32.totalorder %s15, 1
    %p38 = por %p36, %p37
    %p40 = scmp.ne.s32.totalorder %s23, %s39
    %p41 = scmp.eq.s32.totalorder %s15, 0
    %p42 = por %p40, %p41
    %s44 = sadd.s32 %s43, 1
    %p47 = scmp.eq.s32.totalorder %s9, 1
    %p48 = scmp.ne.s32.totalorder %s43, %s45
    %p49 = scmp.eq.s32.totalorder %s9, 0
    %p50 = por %p48, %p49
    %p51 = scmp.ne.s32.totalorder %s43, %s45
    %p52 = scmp.eq.s32.totalorder %s14, 1
    %p53 = por %p51, %p52
    %p54 = scmp.ne.s32.totalorder %s45, %s46
    %p55 = scmp.eq.s32.totalorder %s14, 0
    %p56 = por %p54, %p55
    %p57 = scmp.ne.s32.totalorder %s45, %s46
    %p58 = scmp.eq.s32.totalorder %s15, 1
    %p59 = por %p57, %p58
    %p61 = scmp.ne.s32.totalorder %s46, %s60
    %p62 = scmp.eq.s32.totalorder %s15, 0
    %p63 = por %p61, %p62
    %s65 = sadd.s32 %s64, 1
    %p68 = scmp.eq.s32.totalorder %s9, 1
    %p69 = scmp.ne.s32.totalorder %s64, %s66
    %p70 = scmp.eq.s32.totalorder %s9, 0
    %p71 = por %p69, %p70
    %p72 = scmp.ne.s32.totalorder %s64, %s66
    %p73 = scmp.eq.s32.totalorder %s14, 1
    %p74 = por %p72, %p73
    %p75 = scmp.ne.s32.totalorder %s66, %s67
    %p76 = scmp.eq.s32.totalorder %s14, 0
    %p77 = por %p75, %p76
    %p78 = scmp.ne.s32.totalorder %s66, %s67
    %p79 = scmp.eq.s32.totalorder %s15, 1
    %p80 = por %p78, %p79
    %p82 = scmp.ne.s32.totalorder %s67, %s81
    %p83 = scmp.eq.s32.totalorder %s15, 0
    %p84 = por %p82, %p83
    %s85 = ssub.s32 %s9, %s16
    %p86 = scmp.eq.s32.totalorder %s85, 0
    %s88 = sadd.s32 %s87, 1
    %s89 = scalar_select %p86, %s87, %s88
    %p92 = pneg %p86
    %p93 = scmp.eq.s32.totalorder %s9, 1
    %p94 = por %p92, %p93
    %p95 = scmp.ne.s32.totalorder %s87, %s90
    %p96 = scmp.eq.s32.totalorder %s9, 0
    %p97 = por %p95, %p96
    %p98 = scmp.ne.s32.totalorder %s87, %s90
    %p99 = scmp.eq.s32.totalorder %s14, 1
    %p100 = por %p98, %p99
    %p101 = scmp.ne.s32.totalorder %s90, %s91
    %p102 = scmp.eq.s32.totalorder %s14, 0
    %p103 = por %p101, %p102
    %p104 = scmp.ne.s32.totalorder %s90, %s91
    %p105 = scmp.eq.s32.totalorder %s15, 1
    %p106 = por %p104, %p105
    %p108 = scmp.ne.s32.totalorder %s91, %s107
    %p109 = scmp.eq.s32.totalorder %s15, 0
    %p110 = por %p108, %p109
    %p111 = scmp.le.s32.totalorder 1, %s9
    %p112 = scmp.lt.s32.totalorder %s9, 3
    %p113 = pnand %p111, %p112
    %p114 = pneg %p113
    // Predicated region
    $region9: #{dqn_forward.2} parent=5 // pred_check
      _
    $region10: #{dqn_forward.2} parent=5 // pred_check_branch
      %116 = sbr.rel (%p113) target = $region12
    $region11: #{dqn_forward.2} parent=5 // pred_region
      %s117 = ssub.s32 %s9, 1
      // Predicated region
      $region13: #{dqn_forward.2} parent=11 // pred_check
        %p118 = pneg %p56
      $region14: #{dqn_forward.2} parent=11 // pred_check_branch
        %120 = sbr.rel (%p118) target = $region16
      $region15: #{dqn_forward.2} parent=11 // pred_region
        _
      $region16: #{dqn_forward.2} parent=11 // pred_fallthru
        _
      // Predicated region
      $region17: #{dqn_forward.2} parent=11 // pred_check
        %p121 = pneg %p77
      $region18: #{dqn_forward.2} parent=11 // pred_check_branch
        %123 = sbr.rel (%p121) target = $region20
      $region19: #{dqn_forward.2} parent=11 // pred_region
        _
      $region20: #{dqn_forward.2} parent=11 // pred_fallthru
        _
    $region12: #{dqn_forward.2} parent=5 // pred_fallthru
      _
    %p124 = scmp.lt.s32.totalorder %s9, 2
    // Predicated region
    $region21: #{dqn_forward.2} parent=5 // pred_check
      %p125 = pneg %p124
    $region22: #{dqn_forward.2} parent=5 // pred_check_branch
      %127 = sbr.rel (%p125) target = $region24
    $region23: #{dqn_forward.2} parent=5 // pred_region
      // Predicated region
      $region25: #{dqn_forward.2} parent=23 // pred_check
        %p128 = pneg %p29
      $region26: #{dqn_forward.2} parent=23 // pred_check_branch
        %130 = sbr.rel (%p128) target = $region28
      $region27: #{dqn_forward.2} parent=23 // pred_region
        %s131 = smul.u32 50, %s9
        %p132 = scmp.lt.s32.totalorder %s131, 99
        %s133 = scalar_select %p132, %s131, 99
        %s134 = smul.addr %s133, 2
        %s135 = smul.addr %s134, 8
        %s136 = scalar_lea.vmem %s0, %s135
        %s137 = smul.u32 50, %s9
      $region28: #{dqn_forward.2} parent=23 // pred_fallthru
        _
    $region24: #{dqn_forward.2} parent=5 // pred_fallthru
      _
    %p138 = scmp.le.s32.totalorder 1, %s9
    %p139 = scmp.lt.s32.totalorder %s9, 3
    %p140 = pnand %p138, %p139
    %p141 = pneg %p140
    // Predicated region
    $region29: #{dqn_forward.2} parent=5 // pred_check
      _
    $region30: #{dqn_forward.2} parent=5 // pred_check_branch
      %143 = sbr.rel (%p140) target = $region32
    $region31: #{dqn_forward.2} parent=5 // pred_region
      %s144 = ssub.s32 %s9, 1
      %s145 = smul.u32 50, %s14
      %p146 = scmp.lt.s32.totalorder %s145, 99
      %s147 = scalar_select %p146, %s145, 99
      %s148 = smul.addr %s147, 2
      %s149 = smul.addr %s148, 8
      %s150 = scalar_lea.vmem %s0, %s149
      %p151 = pneg %p35
      %p152 = pneg %p32
      %p153 = pneg %p56
      %p154 = pneg %p53
      %p155 = pneg %p77
      %p156 = pneg %p74
      %p157 = pneg %p103
      %p158 = pneg %p100
      %s159 = smul.u32 50, %s14
      %p160 = scmp.lt.s32.totalorder %s159, 99
      %s161 = scalar_select %p160, %s159, 99
      %s162 = smul.addr %s161, 8
      %s163 = scalar_lea.vmem %s3, %s162
      %s164 = smul.u32 50, %s14
      %p165 = scmp.lt.s32.totalorder %s164, 99
      %s166 = scalar_select %p165, %s164, 99
      %s167 = smul.addr %s166, 2
      %s168 = smul.addr %s167, 8
      %s169 = scalar_lea.vmem %s0, %s168
      %s170 = smul.u32 50, %s14
      %s171 = smul.u32 50, %s14
      %p172 = scmp.lt.s32.totalorder %s171, 99
      %s173 = scalar_select %p172, %s171, 99
      %s174 = smul.addr %s173, 8
      %s175 = scalar_lea.vmem %s3, %s174
      %s176 = smul.u32 50, %s14
      %v177 = vld [vmem:[%s169] sm:$0xff]
      %v178 = vld [vmem:[%s169 + $0x8] sm:$0xff]
      %v179 = vld [vmem:[%s169 + $0x10] sm:$0xff]
      %v180 = vld [vmem:[%s169 + $0x18] sm:$0xff]
      %v181 = vld [vmem:[%s169 + $0x20] sm:$0xff]
      %v182 = vld [vmem:[%s169 + $0x28] sm:$0xff]
      %v183 = vld [vmem:[%s169 + $0x30] sm:$0xff]
      %v184 = vld [vmem:[%s169 + $0x38] sm:$0xff]
      %v185 = vld [vmem:[%s169 + $0x40] sm:$0xff]
      %v186 = vld [vmem:[%s169 + $0x48] sm:$0xff]
      %v187 = vld [vmem:[%s169 + $0x50] sm:$0xff]
      %v188 = vld [vmem:[%s169 + $0x58] sm:$0xff]
      %v189 = vld [vmem:[%s169 + $0x60] sm:$0xff]
      %v190 = vld [vmem:[%s169 + $0x68] sm:$0xff]
      %v191 = vld [vmem:[%s169 + $0x70] sm:$0xff]
      %v192 = vld [vmem:[%s169 + $0x78] sm:$0xff]
      %v193 = vld [vmem:[%s169 + $0x80] sm:$0xff]
      %v194 = vld [vmem:[%s169 + $0x88] sm:$0xff]
      %v195 = vld [vmem:[%s169 + $0x90] sm:$0xff]
      %v196 = vld [vmem:[%s169 + $0x98] sm:$0xff]
      %v197 = vld [vmem:[%s169 + $0xa0] sm:$0xff]
      %v198 = vld [vmem:[%s169 + $0xa8] sm:$0xff]
      %v199 = vld [vmem:[%s169 + $0xb0] sm:$0xff]
      %v200 = vld [vmem:[%s169 + $0xb8] sm:$0xff]
      %v201 = vld [vmem:[%s169 + $0xc0] sm:$0xff]
      %v202 = vld [vmem:[%s169 + $0xc8] sm:$0xff]
      %v203 = vld [vmem:[%s169 + $0xd0] sm:$0xff]
      %v204 = vld [vmem:[%s169 + $0xd8] sm:$0xff]
      %v205 = vld [vmem:[%s169 + $0xe0] sm:$0xff]
      %v206 = vld [vmem:[%s169 + $0xe8] sm:$0xff]
      %v207 = vld [vmem:[%s169 + $0xf0] sm:$0xff]
      %v208 = vld [vmem:[%s169 + $0xf8] sm:$0xff]
      %v209 = vld [vmem:[%s169 + $0x100] sm:$0xff]
      %v210 = vld [vmem:[%s169 + $0x108] sm:$0xff]
      %v211 = vld [vmem:[%s169 + $0x110] sm:$0xff]
      %v212 = vld [vmem:[%s169 + $0x118] sm:$0xff]
      %v213 = vld [vmem:[%s169 + $0x120] sm:$0xff]
      %v214 = vld [vmem:[%s169 + $0x128] sm:$0xff]
      %v215 = vld [vmem:[%s169 + $0x130] sm:$0xff]
      %v216 = vld [vmem:[%s169 + $0x138] sm:$0xff]
      %v217 = vld [vmem:[%s169 + $0x140] sm:$0xff]
      %v218 = vld [vmem:[%s169 + $0x148] sm:$0xff]
      %v219 = vld [vmem:[%s169 + $0x150] sm:$0xff]
      %v220 = vld [vmem:[%s169 + $0x158] sm:$0xff]
      %v221 = vld [vmem:[%s169 + $0x160] sm:$0xff]
      %v222 = vld [vmem:[%s169 + $0x168] sm:$0xff]
      %v223 = vld [vmem:[%s169 + $0x170] sm:$0xff]
      %v224 = vld [vmem:[%s169 + $0x178] sm:$0xff]
      %v225 = vld [vmem:[%s169 + $0x180] sm:$0xff]
      %v226 = vld [vmem:[%s169 + $0x188] sm:$0xff]
      %v227 = vld [vmem:[%s169 + $0x190] sm:$0xff]
      %v228 = vld [vmem:[%s169 + $0x198] sm:$0xff]
      %v229 = vld [vmem:[%s169 + $0x1a0] sm:$0xff]
      %v230 = vld [vmem:[%s169 + $0x1a8] sm:$0xff]
      %v231 = vld [vmem:[%s169 + $0x1b0] sm:$0xff]
      %v232 = vld [vmem:[%s169 + $0x1b8] sm:$0xff]
      %v233 = vld [vmem:[%s169 + $0x1c0] sm:$0xff]
      %v234 = vld [vmem:[%s169 + $0x1c8] sm:$0xff]
      %v235 = vld [vmem:[%s169 + $0x1d0] sm:$0xff]
      %v236 = vld [vmem:[%s169 + $0x1d8] sm:$0xff]
      %v237 = vld [vmem:[%s169 + $0x1e0] sm:$0xff]
      %v238 = vld [vmem:[%s169 + $0x1e8] sm:$0xff]
      %v239 = vld [vmem:[%s169 + $0x1f0] sm:$0xff]
      %v240 = vld [vmem:[%s169 + $0x1f8] sm:$0xff]
      %v241 = vld [vmem:[%s169 + $0x200] sm:$0xff]
      %v242 = vld [vmem:[%s169 + $0x208] sm:$0xff]
      %v243 = vld [vmem:[%s169 + $0x210] sm:$0xff]
      %v244 = vld [vmem:[%s169 + $0x218] sm:$0xff]
      %v245 = vld [vmem:[%s169 + $0x220] sm:$0xff]
      %v246 = vld [vmem:[%s169 + $0x228] sm:$0xff]
      %v247 = vld [vmem:[%s169 + $0x230] sm:$0xff]
      %v248 = vld [vmem:[%s169 + $0x238] sm:$0xff]
      %v249 = vld [vmem:[%s169 + $0x240] sm:$0xff]
      %v250 = vld [vmem:[%s169 + $0x248] sm:$0xff]
      %v251 = vld [vmem:[%s169 + $0x250] sm:$0xff]
      %v252 = vld [vmem:[%s169 + $0x258] sm:$0xff]
      %v253 = vld [vmem:[%s169 + $0x260] sm:$0xff]
      %v254 = vld [vmem:[%s169 + $0x268] sm:$0xff]
      %v255 = vld [vmem:[%s169 + $0x270] sm:$0xff]
      %v256 = vld [vmem:[%s169 + $0x278] sm:$0xff]
      %v257 = vld [vmem:[%s169 + $0x280] sm:$0xff]
      %v258 = vld [vmem:[%s169 + $0x288] sm:$0xff]
      %v259 = vld [vmem:[%s169 + $0x290] sm:$0xff]
      %v260 = vld [vmem:[%s169 + $0x298] sm:$0xff]
      %v261 = vld [vmem:[%s169 + $0x2a0] sm:$0xff]
      %v262 = vld [vmem:[%s169 + $0x2a8] sm:$0xff]
      %v263 = vld [vmem:[%s169 + $0x2b0] sm:$0xff]
      %v264 = vld [vmem:[%s169 + $0x2b8] sm:$0xff]
      %v265 = vld [vmem:[%s169 + $0x2c0] sm:$0xff]
      %v266 = vld [vmem:[%s169 + $0x2c8] sm:$0xff]
      %v267 = vld [vmem:[%s169 + $0x2d0] sm:$0xff]
      %v268 = vld [vmem:[%s169 + $0x2d8] sm:$0xff]
      %v269 = vld [vmem:[%s169 + $0x2e0] sm:$0xff]
      %v270 = vld [vmem:[%s169 + $0x2e8] sm:$0xff]
      %v271 = vld [vmem:[%s169 + $0x2f0] sm:$0xff]
      %v272 = vld [vmem:[%s169 + $0x2f8] sm:$0xff]
      %v273 = vld [vmem:[%s169 + $0x300] sm:$0xff]
      %v274 = vld [vmem:[%s169 + $0x308] sm:$0xff]
      %v275 = vld [vmem:[%s169 + $0x310] sm:$0xff]
      %v276 = vld [vmem:[%s169 + $0x318] sm:$0xff]
      %v277 = vld [vmem:[%s1] sm:$0xff]
      %v278 = vld [vmem:[%s1 + $0x8] sm:$0xff]
      %v279 = vld [vmem:[%s1 + $0x10] sm:$0xff]
      %v280 = vld [vmem:[%s1 + $0x18] sm:$0xff]
      %v281 = vld [vmem:[%s1 + $0x20] sm:$0xff]
      %v282 = vld [vmem:[%s1 + $0x28] sm:$0xff]
      %v283 = vld [vmem:[%s1 + $0x30] sm:$0xff]
      %v284 = vld [vmem:[%s1 + $0x38] sm:$0xff]
      %v285 = vld [vmem:[%s1 + $0x40] sm:$0xff]
      %v286 = vld [vmem:[%s1 + $0x48] sm:$0xff]
      %v287 = vld [vmem:[%s1 + $0x50] sm:$0xff]
      %v288 = vld [vmem:[%s1 + $0x58] sm:$0xff]
      %v289 = vld [vmem:[%s1 + $0x60] sm:$0xff]
      %v290 = vld [vmem:[%s1 + $0x68] sm:$0xff]
      %v291 = vld [vmem:[%s1 + $0x70] sm:$0xff]
      %v292 = vld [vmem:[%s1 + $0x78] sm:$0xff]
      %v293 = vld [vmem:[%s1 + $0x80] sm:$0xff]
      %v294 = vld [vmem:[%s1 + $0x88] sm:$0xff]
      %v295 = vld [vmem:[%s1 + $0x90] sm:$0xff]
      %v296 = vld [vmem:[%s1 + $0x98] sm:$0xff]
      %v297 = vld [vmem:[%s1 + $0xa0] sm:$0xff]
      %v298 = vld [vmem:[%s1 + $0xa8] sm:$0xff]
      %v299 = vld [vmem:[%s1 + $0xb0] sm:$0xff]
      %v300 = vld [vmem:[%s1 + $0xb8] sm:$0xff]
      %v301 = vld [vmem:[%s1 + $0xc0] sm:$0xff]
      %v302 = vld [vmem:[%s1 + $0xc8] sm:$0xff]
      %v303 = vld [vmem:[%s1 + $0xd0] sm:$0xff]
      %v304 = vld [vmem:[%s1 + $0xd8] sm:$0xff]
      %v305 = vld [vmem:[%s1 + $0xe0] sm:$0xff]
      %v306 = vld [vmem:[%s1 + $0xe8] sm:$0xff]
      %v307 = vld [vmem:[%s1 + $0xf0] sm:$0xff]
      %v308 = vld [vmem:[%s1 + $0xf8] sm:$0xff]
      %v309 = vld [vmem:[%s2] sm:$0x1]
      %v311 = vlaneseq
      %v312 = vshrl.u32 %v311, 7
      %v313 = vsub.s32 0, %v312
      %v314 = vrot.slane %v309, %v313
      %316 = vmatprep.subr.mxu0 0.0
      %317 = vmatpush1.msra.mxu0 %v292
      %318 = vmatprep.subr.mxu0 0.0
      %319 = vmatpush1.msra.mxu0 %v291
      %320 = vmatprep.subr.mxu0 0.0
      %321 = vmatpush1.msra.mxu0 %v290
      %322 = vmatprep.subr.mxu0 0.0
      %323 = vmatpush1.msra.mxu0 %v289
      %324 = vmatprep.subr.mxu0 0.0
      %325 = vmatpush1.msra.mxu0 %v288
      %326 = vmatprep.subr.mxu0 0.0
      %327 = vmatpush1.msra.mxu0 %v287
      %328 = vmatprep.subr.mxu0 0.0
      %329 = vmatpush1.msra.mxu0 %v286
      %330 = vmatprep.subr.mxu0 0.0
      %331 = vmatpush1.msra.mxu0 %v285
      %332 = vmatprep.subr.mxu0 0.0
      %333 = vmatpush1.msra.mxu0 %v284
      %334 = vmatprep.subr.mxu0 0.0
      %335 = vmatpush1.msra.mxu0 %v283
      %336 = vmatprep.subr.mxu0 0.0
      %337 = vmatpush1.msra.mxu0 %v282
      %338 = vmatprep.subr.mxu0 0.0
      %339 = vmatpush1.msra.mxu0 %v281
      %340 = vmatprep.subr.mxu0 0.0
      %341 = vmatpush1.msra.mxu0 %v280
      %342 = vmatprep.subr.mxu0 0.0
      %343 = vmatpush1.msra.mxu0 %v279
      %344 = vmatprep.subr.mxu0 0.0
      %345 = vmatpush1.msra.mxu0 %v278
      %346 = vmatprep.subr.mxu0 0.0
      %347 = vmatpush1.msra.mxu0 %v277
      %348 = vmatprep.subr.mxu0 0.0
      %349 = vmatpush2.msra.mxu0 %v308
      %350 = vmatprep.subr.mxu0 0.0
      %351 = vmatpush2.msra.mxu0 %v307
      %352 = vmatprep.subr.mxu0 0.0
      %353 = vmatpush2.msra.mxu0 %v306
      %354 = vmatprep.subr.mxu0 0.0
      %355 = vmatpush2.msra.mxu0 %v305
      %356 = vmatprep.subr.mxu0 0.0
      %357 = vmatpush2.msra.mxu0 %v304
      %358 = vmatprep.subr.mxu0 0.0
      %359 = vmatpush2.msra.mxu0 %v303
      %360 = vmatprep.subr.mxu0 0.0
      %361 = vmatpush2.msra.mxu0 %v302
      %362 = vmatprep.subr.mxu0 0.0
      %363 = vmatpush2.msra.mxu0 %v301
      %364 = vmatprep.subr.mxu0 0.0
      %365 = vmatpush2.msra.mxu0 %v300
      %366 = vmatprep.subr.mxu0 0.0
      %367 = vmatpush2.msra.mxu0 %v299
      %368 = vmatprep.subr.mxu0 0.0
      %369 = vmatpush2.msra.mxu0 %v298
      %370 = vmatprep.subr.mxu0 0.0
      %371 = vmatpush2.msra.mxu0 %v297
      %372 = vmatprep.subr.mxu0 0.0
      %373 = vmatpush2.msra.mxu0 %v296
      %374 = vmatprep.subr.mxu0 0.0
      %375 = vmatpush2.msra.mxu0 %v295
      %376 = vmatprep.subr.mxu0 0.0
      %377 = vmatpush2.msra.mxu0 %v294
      %378 = vmatprep.subr.mxu0 0.0
      %379 = vmatpush2.msra.mxu0 %v293
      %380 = vmatprep.mubr.f32.mxu0 %v178
      %381 = vmatmul.mubr.f32.gmra.mxu0 %v177
      %v382 = vpop.f32.mrf.mxu0
      %v383 = vadd.f32 %v314, %v382
      %v384 = vpop.f32.mrf.mxu0
      %385 = vmatprep.mubr.f32.mxu0 %v180
      %386 = vmatmul.mubr.f32.gmra.mxu0 %v179
      %v387 = vpop.f32.mrf.mxu0
      %v388 = vadd.f32 %v314, %v387
      %v389 = vpop.f32.mrf.mxu0
      %390 = vmatprep.mubr.f32.mxu0 %v182
      %391 = vmatmul.mubr.f32.gmra.mxu0 %v181
      %v392 = vpop.f32.mrf.mxu0
      %v393 = vadd.f32 %v314, %v392
      %v394 = vpop.f32.mrf.mxu0
      %395 = vmatprep.mubr.f32.mxu0 %v184
      %396 = vmatmul.mubr.f32.gmra.mxu0 %v183
      %v397 = vpop.f32.mrf.mxu0
      %v398 = vadd.f32 %v314, %v397
      %v399 = vpop.f32.mrf.mxu0
      %400 = vmatprep.mubr.f32.mxu0 %v186
      %401 = vmatmul.mubr.f32.gmra.mxu0 %v185
      %v402 = vpop.f32.mrf.mxu0
      %v403 = vadd.f32 %v314, %v402
      %v404 = vpop.f32.mrf.mxu0
      %405 = vmatprep.mubr.f32.mxu0 %v188
      %406 = vmatmul.mubr.f32.gmra.mxu0 %v187
      %v407 = vpop.f32.mrf.mxu0
      %v408 = vadd.f32 %v314, %v407
      %v409 = vpop.f32.mrf.mxu0
      %410 = vmatprep.mubr.f32.mxu0 %v190
      %411 = vmatmul.mubr.f32.gmra.mxu0 %v189
      %v412 = vpop.f32.mrf.mxu0
      %v413 = vadd.f32 %v314, %v412
      %v414 = vpop.f32.mrf.mxu0
      %415 = vmatprep.mubr.f32.mxu0 %v192
      %416 = vmatmul.mubr.f32.gmra.mxu0 %v191
      %v417 = vpop.f32.mrf.mxu0
      %v418 = vadd.f32 %v314, %v417
      %v419 = vpop.f32.mrf.mxu0
      %420 = vmatprep.mubr.f32.mxu0 %v194
      %421 = vmatmul.mubr.f32.gmra.mxu0 %v193
      %v422 = vpop.f32.mrf.mxu0
      %v423 = vadd.f32 %v314, %v422
      %v424 = vpop.f32.mrf.mxu0
      %425 = vmatprep.mubr.f32.mxu0 %v196
      %426 = vmatmul.mubr.f32.gmra.mxu0 %v195
      %v427 = vpop.f32.mrf.mxu0
      %v428 = vadd.f32 %v314, %v427
      %v429 = vpop.f32.mrf.mxu0
      %430 = vmatprep.mubr.f32.mxu0 %v198
      %431 = vmatmul.mubr.f32.gmra.mxu0 %v197
      %v432 = vpop.f32.mrf.mxu0
      %v433 = vadd.f32 %v314, %v432
      %v434 = vpop.f32.mrf.mxu0
      %435 = vmatprep.mubr.f32.mxu0 %v200
      %436 = vmatmul.mubr.f32.gmra.mxu0 %v199
      %v437 = vpop.f32.mrf.mxu0
      %v438 = vadd.f32 %v314, %v437
      %v439 = vpop.f32.mrf.mxu0
      %440 = vmatprep.mubr.f32.mxu0 %v202
      %441 = vmatmul.mubr.f32.gmra.mxu0 %v201
      %v442 = vpop.f32.mrf.mxu0
      %v443 = vadd.f32 %v314, %v442
      %v444 = vpop.f32.mrf.mxu0
      %445 = vmatprep.mubr.f32.mxu0 %v204
      %446 = vmatmul.mubr.f32.gmra.mxu0 %v203
      %v447 = vpop.f32.mrf.mxu0
      %v448 = vadd.f32 %v314, %v447
      %v449 = vpop.f32.mrf.mxu0
      %450 = vmatprep.mubr.f32.mxu0 %v206
      %451 = vmatmul.mubr.f32.gmra.mxu0 %v205
      %v452 = vpop.f32.mrf.mxu0
      %v453 = vadd.f32 %v314, %v452
      %v454 = vpop.f32.mrf.mxu0
      %455 = vmatprep.mubr.f32.mxu0 %v208
      %456 = vmatmul.mubr.f32.gmra.mxu0 %v207
      %v457 = vpop.f32.mrf.mxu0
      %v458 = vadd.f32 %v314, %v457
      %v459 = vpop.f32.mrf.mxu0
      %460 = vmatprep.mubr.f32.mxu0 %v210
      %461 = vmatmul.mubr.f32.gmra.mxu0 %v209
      %v462 = vpop.f32.mrf.mxu0
      %v463 = vadd.f32 %v314, %v462
      %v464 = vpop.f32.mrf.mxu0
      %465 = vmatprep.mubr.f32.mxu0 %v212
      %466 = vmatmul.mubr.f32.gmra.mxu0 %v211
      %v467 = vpop.f32.mrf.mxu0
      %v468 = vadd.f32 %v314, %v467
      %v469 = vpop.f32.mrf.mxu0
      %470 = vmatprep.mubr.f32.mxu0 %v214
      %471 = vmatmul.mubr.f32.gmra.mxu0 %v213
      %v472 = vpop.f32.mrf.mxu0
      %v473 = vadd.f32 %v314, %v472
      %v474 = vpop.f32.mrf.mxu0
      %475 = vmatprep.mubr.f32.mxu0 %v216
      %476 = vmatmul.mubr.f32.gmra.mxu0 %v215
      %v477 = vpop.f32.mrf.mxu0
      %v478 = vadd.f32 %v314, %v477
      %v479 = vpop.f32.mrf.mxu0
      %480 = vmatprep.mubr.f32.mxu0 %v218
      %481 = vmatmul.mubr.f32.gmra.mxu0 %v217
      %v482 = vpop.f32.mrf.mxu0
      %v483 = vadd.f32 %v314, %v482
      %v484 = vpop.f32.mrf.mxu0
      %485 = vmatprep.mubr.f32.mxu0 %v220
      %486 = vmatmul.mubr.f32.gmra.mxu0 %v219
      %v487 = vpop.f32.mrf.mxu0
      %v488 = vadd.f32 %v314, %v487
      %v489 = vpop.f32.mrf.mxu0
      %490 = vmatprep.mubr.f32.mxu0 %v222
      %491 = vmatmul.mubr.f32.gmra.mxu0 %v221
      %v492 = vpop.f32.mrf.mxu0
      %v493 = vadd.f32 %v314, %v492
      %v494 = vpop.f32.mrf.mxu0
      %495 = vmatprep.mubr.f32.mxu0 %v224
      %496 = vmatmul.mubr.f32.gmra.mxu0 %v223
      %v497 = vpop.f32.mrf.mxu0
      %v498 = vadd.f32 %v314, %v497
      %v499 = vpop.f32.mrf.mxu0
      %500 = vmatprep.mubr.f32.mxu0 %v226
      %501 = vmatmul.mubr.f32.gmra.mxu0 %v225
      %v502 = vpop.f32.mrf.mxu0
      %v503 = vadd.f32 %v314, %v502
      %v504 = vpop.f32.mrf.mxu0
      %505 = vmatprep.mubr.f32.mxu0 %v228
      %506 = vmatmul.mubr.f32.gmra.mxu0 %v227
      %v507 = vpop.f32.mrf.mxu0
      %v508 = vadd.f32 %v314, %v507
      %v509 = vpop.f32.mrf.mxu0
      %510 = vmatprep.mubr.f32.mxu0 %v230
      %511 = vmatmul.mubr.f32.gmra.mxu0 %v229
      %v512 = vpop.f32.mrf.mxu0
      %v513 = vadd.f32 %v314, %v512
      %v514 = vpop.f32.mrf.mxu0
      %515 = vmatprep.mubr.f32.mxu0 %v232
      %516 = vmatmul.mubr.f32.gmra.mxu0 %v231
      %v517 = vpop.f32.mrf.mxu0
      %v518 = vadd.f32 %v314, %v517
      %v519 = vpop.f32.mrf.mxu0
      %520 = vmatprep.mubr.f32.mxu0 %v234
      %521 = vmatmul.mubr.f32.gmra.mxu0 %v233
      %v522 = vpop.f32.mrf.mxu0
      %v523 = vadd.f32 %v314, %v522
      %v524 = vpop.f32.mrf.mxu0
      %525 = vmatprep.mubr.f32.mxu0 %v236
      %526 = vmatmul.mubr.f32.gmra.mxu0 %v235
      %v527 = vpop.f32.mrf.mxu0
      %v528 = vadd.f32 %v314, %v527
      %v529 = vpop.f32.mrf.mxu0
      %530 = vmatprep.mubr.f32.mxu0 %v238
      %531 = vmatmul.mubr.f32.gmra.mxu0 %v237
      %v532 = vpop.f32.mrf.mxu0
      %v533 = vadd.f32 %v314, %v532
      %v534 = vpop.f32.mrf.mxu0
      %535 = vmatprep.mubr.f32.mxu0 %v240
      %536 = vmatmul.mubr.f32.gmra.mxu0 %v239
      %v537 = vpop.f32.mrf.mxu0
      %v538 = vadd.f32 %v314, %v537
      %v539 = vpop.f32.mrf.mxu0
      %540 = vmatprep.mubr.f32.mxu0 %v242
      %541 = vmatmul.mubr.f32.gmra.mxu0 %v241
      %v542 = vpop.f32.mrf.mxu0
      %v543 = vadd.f32 %v314, %v542
      %v544 = vpop.f32.mrf.mxu0
      %545 = vmatprep.mubr.f32.mxu0 %v244
      %546 = vmatmul.mubr.f32.gmra.mxu0 %v243
      %v547 = vpop.f32.mrf.mxu0
      %v548 = vadd.f32 %v314, %v547
      %v549 = vpop.f32.mrf.mxu0
      %550 = vmatprep.mubr.f32.mxu0 %v246
      %551 = vmatmul.mubr.f32.gmra.mxu0 %v245
      %v552 = vpop.f32.mrf.mxu0
      %v553 = vadd.f32 %v314, %v552
      %v554 = vpop.f32.mrf.mxu0
      %555 = vmatprep.mubr.f32.mxu0 %v248
      %556 = vmatmul.mubr.f32.gmra.mxu0 %v247
      %v557 = vpop.f32.mrf.mxu0
      %v558 = vadd.f32 %v314, %v557
      %v559 = vpop.f32.mrf.mxu0
      %560 = vmatprep.mubr.f32.mxu0 %v250
      %561 = vmatmul.mubr.f32.gmra.mxu0 %v249
      %v562 = vpop.f32.mrf.mxu0
      %v563 = vadd.f32 %v314, %v562
      %v564 = vpop.f32.mrf.mxu0
      %565 = vmatprep.mubr.f32.mxu0 %v252
      %566 = vmatmul.mubr.f32.gmra.mxu0 %v251
      %v567 = vpop.f32.mrf.mxu0
      %v568 = vadd.f32 %v314, %v567
      %v569 = vpop.f32.mrf.mxu0
      %570 = vmatprep.mubr.f32.mxu0 %v254
      %571 = vmatmul.mubr.f32.gmra.mxu0 %v253
      %v572 = vpop.f32.mrf.mxu0
      %v573 = vadd.f32 %v314, %v572
      %v574 = vpop.f32.mrf.mxu0
      %575 = vmatprep.mubr.f32.mxu0 %v256
      %576 = vmatmul.mubr.f32.gmra.mxu0 %v255
      %v577 = vpop.f32.mrf.mxu0
      %v578 = vadd.f32 %v314, %v577
      %v579 = vpop.f32.mrf.mxu0
      %580 = vmatprep.mubr.f32.mxu0 %v258
      %581 = vmatmul.mubr.f32.gmra.mxu0 %v257
      %v582 = vpop.f32.mrf.mxu0
      %v583 = vadd.f32 %v314, %v582
      %v584 = vpop.f32.mrf.mxu0
      %585 = vmatprep.mubr.f32.mxu0 %v260
      %586 = vmatmul.mubr.f32.gmra.mxu0 %v259
      %v587 = vpop.f32.mrf.mxu0
      %v588 = vadd.f32 %v314, %v587
      %v589 = vpop.f32.mrf.mxu0
      %590 = vmatprep.mubr.f32.mxu0 %v262
      %591 = vmatmul.mubr.f32.gmra.mxu0 %v261
      %v592 = vpop.f32.mrf.mxu0
      %v593 = vadd.f32 %v314, %v592
      %v594 = vpop.f32.mrf.mxu0
      %595 = vmatprep.mubr.f32.mxu0 %v264
      %596 = vmatmul.mubr.f32.gmra.mxu0 %v263
      %v597 = vpop.f32.mrf.mxu0
      %v598 = vadd.f32 %v314, %v597
      %v599 = vpop.f32.mrf.mxu0
      %600 = vmatprep.mubr.f32.mxu0 %v266
      %601 = vmatmul.mubr.f32.gmra.mxu0 %v265
      %v602 = vpop.f32.mrf.mxu0
      %v603 = vadd.f32 %v314, %v602
      %v604 = vpop.f32.mrf.mxu0
      %605 = vmatprep.mubr.f32.mxu0 %v268
      %606 = vmatmul.mubr.f32.gmra.mxu0 %v267
      %v607 = vpop.f32.mrf.mxu0
      %v608 = vadd.f32 %v314, %v607
      %v609 = vpop.f32.mrf.mxu0
      %610 = vmatprep.mubr.f32.mxu0 %v270
      %611 = vmatmul.mubr.f32.gmra.mxu0 %v269
      %v612 = vpop.f32.mrf.mxu0
      %v613 = vadd.f32 %v314, %v612
      %v614 = vpop.f32.mrf.mxu0
      %615 = vmatprep.mubr.f32.mxu0 %v272
      %616 = vmatmul.mubr.f32.gmra.mxu0 %v271
      %v617 = vpop.f32.mrf.mxu0
      %v618 = vadd.f32 %v314, %v617
      %v619 = vpop.f32.mrf.mxu0
      %620 = vmatprep.mubr.f32.mxu0 %v274
      %621 = vmatmul.mubr.f32.gmra.mxu0 %v273
      %v622 = vpop.f32.mrf.mxu0
      %v623 = vadd.f32 %v314, %v622
      %v624 = vpop.f32.mrf.mxu0
      %625 = vmatprep.mubr.f32.mxu0 %v276
      %626 = vmatmul.mubr.f32.gmra.mxu0 %v275
      %v627 = vpop.f32.mrf.mxu0
      %v628 = vadd.f32 %v314, %v627
      %v629 = vpop.f32.mrf.mxu0
      %630 = vdwg.mxu0
      %v631 = vmax.f32 %v383, 0.0
      %v632 = vmax.f32 %v388, 0.0
      %v633 = vmax.f32 %v393, 0.0
      %v634 = vmax.f32 %v398, 0.0
      %v635 = vmax.f32 %v403, 0.0
      %v636 = vmax.f32 %v408, 0.0
      %v637 = vmax.f32 %v413, 0.0
      %v638 = vmax.f32 %v418, 0.0
      %v639 = vmax.f32 %v423, 0.0
      %v640 = vmax.f32 %v428, 0.0
      %v641 = vmax.f32 %v433, 0.0
      %v642 = vmax.f32 %v438, 0.0
      %v643 = vmax.f32 %v443, 0.0
      %v644 = vmax.f32 %v448, 0.0
      %v645 = vmax.f32 %v453, 0.0
      %v646 = vmax.f32 %v458, 0.0
      %v647 = vmax.f32 %v463, 0.0
      %v648 = vmax.f32 %v468, 0.0
      %v649 = vmax.f32 %v473, 0.0
      %v650 = vmax.f32 %v478, 0.0
      %v651 = vmax.f32 %v483, 0.0
      %v652 = vmax.f32 %v488, 0.0
      %v653 = vmax.f32 %v493, 0.0
      %v654 = vmax.f32 %v498, 0.0
      %v655 = vmax.f32 %v503, 0.0
      %v656 = vmax.f32 %v508, 0.0
      %v657 = vmax.f32 %v513, 0.0
      %v658 = vmax.f32 %v518, 0.0
      %v659 = vmax.f32 %v523, 0.0
      %v660 = vmax.f32 %v528, 0.0
      %v661 = vmax.f32 %v533, 0.0
      %v662 = vmax.f32 %v538, 0.0
      %v663 = vmax.f32 %v543, 0.0
      %v664 = vmax.f32 %v548, 0.0
      %v665 = vmax.f32 %v553, 0.0
      %v666 = vmax.f32 %v558, 0.0
      %v667 = vmax.f32 %v563, 0.0
      %v668 = vmax.f32 %v568, 0.0
      %v669 = vmax.f32 %v573, 0.0
      %v670 = vmax.f32 %v578, 0.0
      %v671 = vmax.f32 %v583, 0.0
      %v672 = vmax.f32 %v588, 0.0
      %v673 = vmax.f32 %v593, 0.0
      %v674 = vmax.f32 %v598, 0.0
      %v675 = vmax.f32 %v603, 0.0
      %v676 = vmax.f32 %v608, 0.0
      %v677 = vmax.f32 %v613, 0.0
      %v678 = vmax.f32 %v618, 0.0
      %v679 = vmax.f32 %v623, 0.0
      %v680 = vmax.f32 %v628, 0.0
      %vm681 = vcmask 261120
      %682 = vst.msk [vmem:[%s175] sm:$0xff] %vm681, %v631
      %683 = vst.msk [vmem:[%s175 + $0x8] sm:$0xff] %vm681, %v632
      %684 = vst.msk [vmem:[%s175 + $0x10] sm:$0xff] %vm681, %v633
      %685 = vst.msk [vmem:[%s175 + $0x18] sm:$0xff] %vm681, %v634
      %686 = vst.msk [vmem:[%s175 + $0x20] sm:$0xff] %vm681, %v635
      %687 = vst.msk [vmem:[%s175 + $0x28] sm:$0xff] %vm681, %v636
      %688 = vst.msk [vmem:[%s175 + $0x30] sm:$0xff] %vm681, %v637
      %689 = vst.msk [vmem:[%s175 + $0x38] sm:$0xff] %vm681, %v638
      %690 = vst.msk [vmem:[%s175 + $0x40] sm:$0xff] %vm681, %v639
      %691 = vst.msk [vmem:[%s175 + $0x48] sm:$0xff] %vm681, %v640
      %692 = vst.msk [vmem:[%s175 + $0x50] sm:$0xff] %vm681, %v641
      %693 = vst.msk [vmem:[%s175 + $0x58] sm:$0xff] %vm681, %v642
      %694 = vst.msk [vmem:[%s175 + $0x60] sm:$0xff] %vm681, %v643
      %695 = vst.msk [vmem:[%s175 + $0x68] sm:$0xff] %vm681, %v644
      %696 = vst.msk [vmem:[%s175 + $0x70] sm:$0xff] %vm681, %v645
      %697 = vst.msk [vmem:[%s175 + $0x78] sm:$0xff] %vm681, %v646
      %698 = vst.msk [vmem:[%s175 + $0x80] sm:$0xff] %vm681, %v647
      %699 = vst.msk [vmem:[%s175 + $0x88] sm:$0xff] %vm681, %v648
      %700 = vst.msk [vmem:[%s175 + $0x90] sm:$0xff] %vm681, %v649
      %701 = vst.msk [vmem:[%s175 + $0x98] sm:$0xff] %vm681, %v650
      %702 = vst.msk [vmem:[%s175 + $0xa0] sm:$0xff] %vm681, %v651
      %703 = vst.msk [vmem:[%s175 + $0xa8] sm:$0xff] %vm681, %v652
      %704 = vst.msk [vmem:[%s175 + $0xb0] sm:$0xff] %vm681, %v653
      %705 = vst.msk [vmem:[%s175 + $0xb8] sm:$0xff] %vm681, %v654
      %706 = vst.msk [vmem:[%s175 + $0xc0] sm:$0xff] %vm681, %v655
      %707 = vst.msk [vmem:[%s175 + $0xc8] sm:$0xff] %vm681, %v656
      %708 = vst.msk [vmem:[%s175 + $0xd0] sm:$0xff] %vm681, %v657
      %709 = vst.msk [vmem:[%s175 + $0xd8] sm:$0xff] %vm681, %v658
      %710 = vst.msk [vmem:[%s175 + $0xe0] sm:$0xff] %vm681, %v659
      %711 = vst.msk [vmem:[%s175 + $0xe8] sm:$0xff] %vm681, %v660
      %712 = vst.msk [vmem:[%s175 + $0xf0] sm:$0xff] %vm681, %v661
      %713 = vst.msk [vmem:[%s175 + $0xf8] sm:$0xff] %vm681, %v662
      %714 = vst.msk [vmem:[%s175 + $0x100] sm:$0xff] %vm681, %v663
      %715 = vst.msk [vmem:[%s175 + $0x108] sm:$0xff] %vm681, %v664
      %716 = vst.msk [vmem:[%s175 + $0x110] sm:$0xff] %vm681, %v665
      %717 = vst.msk [vmem:[%s175 + $0x118] sm:$0xff] %vm681, %v666
      %718 = vst.msk [vmem:[%s175 + $0x120] sm:$0xff] %vm681, %v667
      %719 = vst.msk [vmem:[%s175 + $0x128] sm:$0xff] %vm681, %v668
      %720 = vst.msk [vmem:[%s175 + $0x130] sm:$0xff] %vm681, %v669
      %721 = vst.msk [vmem:[%s175 + $0x138] sm:$0xff] %vm681, %v670
      %722 = vst.msk [vmem:[%s175 + $0x140] sm:$0xff] %vm681, %v671
      %723 = vst.msk [vmem:[%s175 + $0x148] sm:$0xff] %vm681, %v672
      %724 = vst.msk [vmem:[%s175 + $0x150] sm:$0xff] %vm681, %v673
      %725 = vst.msk [vmem:[%s175 + $0x158] sm:$0xff] %vm681, %v674
      %726 = vst.msk [vmem:[%s175 + $0x160] sm:$0xff] %vm681, %v675
      %727 = vst.msk [vmem:[%s175 + $0x168] sm:$0xff] %vm681, %v676
      %728 = vst.msk [vmem:[%s175 + $0x170] sm:$0xff] %vm681, %v677
      %729 = vst.msk [vmem:[%s175 + $0x178] sm:$0xff] %vm681, %v678
      %730 = vst.msk [vmem:[%s175 + $0x180] sm:$0xff] %vm681, %v679
      %731 = vst.msk [vmem:[%s175 + $0x188] sm:$0xff] %vm681, %v680
      %s732 = smul.u32 50, %s14
      %p733 = scmp.lt.s32.totalorder %s732, 99
      %s734 = scalar_select %p733, %s732, 99
      %s735 = smul.addr %s734, 8
      %s736 = scalar_lea.vmem %s3, %s735
      // Predicated region
      $region33: #{dqn_forward.2} parent=31 // pred_check
        %p737 = pneg %p100
      $region34: #{dqn_forward.2} parent=31 // pred_check_branch
        %739 = sbr.rel (%p737) target = $region36
      $region35: #{dqn_forward.2} parent=31 // pred_region
        %s740 = smul.u32 50, %s14
      $region36: #{dqn_forward.2} parent=31 // pred_fallthru
        _
    $region32: #{dqn_forward.2} parent=5 // pred_fallthru
      _
    %p741 = scmp.le.s32.totalorder 2, %s9
    // Predicated region
    $region37: #{dqn_forward.2} parent=5 // pred_check
      %p742 = pneg %p741
    $region38: #{dqn_forward.2} parent=5 // pred_check_branch
      %744 = sbr.rel (%p742) target = $region40
    $region39: #{dqn_forward.2} parent=5 // pred_region
      %s745 = ssub.s32 %s9, 2
      // Predicated region
      $region41: #{dqn_forward.2} parent=39 // pred_check
        %p746 = pneg %p106
      $region42: #{dqn_forward.2} parent=39 // pred_check_branch
        %748 = sbr.rel (%p746) target = $region44
      $region43: #{dqn_forward.2} parent=39 // pred_region
        %s749 = smul.u32 50, %s15
        %p750 = scmp.lt.s32.totalorder %s749, 99
        %s751 = scalar_select %p750, %s749, 99
        %s752 = smul.addr %s751, 8
        %s753 = scalar_lea.vmem %s3, %s752
      $region44: #{dqn_forward.2} parent=39 // pred_fallthru
        _
    $region40: #{dqn_forward.2} parent=5 // pred_fallthru
      _
  $region6: #{dqn_forward.2} parent=0 // loop_footer
    %s13 = sadd.s32 1, %s9
  $region7: #{dqn_forward.2} parent=0 // loop_footer_branch
    %8 = sbr.rel target = $region3
  $region8: #{dqn_forward.2} parent=0 // loop_exit
    _

// kernel: dqn_forward.3
$region0: #{dqn_forward.3}
  #allocation0 [shape = 'u32[]', space=smem, size = 0x4, offset = 0x4, fixed_abs, tag = 'smem constant byte address 0x4 - core index']
  #allocation1 [shape = 'u32[144,128]{1,0:T(1,128)}', space=vmem, size = 0x12000, scoped, tag = 'internal scratch']
  #allocation2 [shape = 'f32[1]{0:T(128)S(6)}', space=smem, size = 0x200, scoped, tag = 'scoped memory for dqn_forward.3']
  #allocation3 [shape = 'f32[1]{0:T(128)S(6)}', space=smem, size = 0x200, scoped, tag = 'scoped memory for dqn_forward.3']
  %s0 = inlined_call_operand.vmem [shape: f32[2,9,9,512], index: 0, kind: input, shape index: {}]
  %s1 = inlined_call_operand.vmem [shape: f32[1,512], index: 1, kind: input, shape index: {}]
  %s2 = inlined_call_operand.<no memory space> [shape: f32[1], index: 2, kind: input, shape index: {}]
  %s3 = inlined_call_operand.vmem [shape: f32[1,9], index: 3, kind: input, shape index: {}]
  %s4 = inlined_call_operand.<no memory space> [shape: f32[1], index: 4, kind: input, shape index: {}]
  %s5 = inlined_call_operand.vmem [shape: f32[9,4], index: 5, kind: input, shape index: {}]
  %s6 = inlined_call_operand.vmem [shape: f32[1,4], index: 6, kind: input, shape index: {}]
  %s7 = inlined_call_operand.hbm [shape: f32[2,4], index: 7, kind: output, shape index: {}]
  %s8 = sld [smem:[#allocation0]]
  $region38: #{dqn_forward.3} parent=0
    _
  %s10 = ssub.s32 1, %s8
  %s11 = scalar_select 0, %s10, %s8
  %12 = sst [smem:[#allocation2]] %s2
  %13 = sst [smem:[#allocation3]] %s4
  $region1: #{dqn_forward.3} parent=0
    #allocation4 [shape = 'u8[1024]{0}', space=vmem, size = 0x400, scoped, tag = 'output window, operand 0, single buffered']
    #allocation5 [shape = 's32[1]{0}', space=sflag, size = 0x4, scoped, tag = 'scoped memory for dqn_forward.3']
    %14 = vsyncpa [#allocation5], 0
    // Predicated region
    $region2: #{dqn_forward.3} parent=1 // pred_check
      _
    $region3: #{dqn_forward.3} parent=1 // pred_check_branch
      %16 = sbr.rel (0) target = $region5
    $region4: #{dqn_forward.3} parent=1 // pred_region
      _
    $region5: #{dqn_forward.3} parent=1 // pred_fallthru
      _
    // Predicated region
    $region6: #{dqn_forward.3} parent=1 // pred_check
      _
    $region7: #{dqn_forward.3} parent=1 // pred_check_branch
      %18 = sbr.rel (0) target = $region9
    $region8: #{dqn_forward.3} parent=1 // pred_region
      _
    $region9: #{dqn_forward.3} parent=1 // pred_fallthru
      _
    // Predicated region
    $region10: #{dqn_forward.3} parent=1 // pred_check
      _
    $region11: #{dqn_forward.3} parent=1 // pred_check_branch
      %20 = sbr.rel (0) target = $region13
    $region12: #{dqn_forward.3} parent=1 // pred_region
      _
    $region13: #{dqn_forward.3} parent=1 // pred_fallthru
      _
    // Predicated region
    $region14: #{dqn_forward.3} parent=1 // pred_check
      _
    $region15: #{dqn_forward.3} parent=1 // pred_check_branch
      %22 = sbr.rel (0) target = $region17
    $region16: #{dqn_forward.3} parent=1 // pred_region
      _
    $region17: #{dqn_forward.3} parent=1 // pred_fallthru
      _
    // Predicated region
    $region18: #{dqn_forward.3} parent=1 // pred_check
      _
    $region19: #{dqn_forward.3} parent=1 // pred_check_branch
      %24 = sbr.rel (0) target = $region21
    $region20: #{dqn_forward.3} parent=1 // pred_region
      _
    $region21: #{dqn_forward.3} parent=1 // pred_fallthru
      _
    // Predicated region
    $region22: #{dqn_forward.3} parent=1 // pred_check
      _
    $region23: #{dqn_forward.3} parent=1 // pred_check_branch
      %26 = sbr.rel (0) target = $region25
    $region24: #{dqn_forward.3} parent=1 // pred_region
      _
    $region25: #{dqn_forward.3} parent=1 // pred_fallthru
      _
    // Predicated region
    $region26: #{dqn_forward.3} parent=1 // pred_check
      _
    $region27: #{dqn_forward.3} parent=1 // pred_check_branch
      %28 = sbr.rel (0) target = $region29
    $region28: #{dqn_forward.3} parent=1 // pred_region
      _
    $region29: #{dqn_forward.3} parent=1 // pred_fallthru
      _
    %v29 = vld [vmem:[%s0] sm:$0xff]
    %v30 = vld [vmem:[%s0 + $0x8] sm:$0xff]
    %v31 = vld [vmem:[%s0 + $0x10] sm:$0xff]
    %v32 = vld [vmem:[%s0 + $0x18] sm:$0xff]
    %v33 = vld [vmem:[%s0 + $0x20] sm:$0x1]
    %v34 = vld [vmem:[%s0 + $0x28] sm:$0x1]
    %v35 = vld [vmem:[%s0 + $0x30] sm:$0x1]
    %v36 = vld [vmem:[%s0 + $0x38] sm:$0x1]
    %v37 = vld [vmem:[%s0 + $0x40] sm:$0xff]
    %v38 = vld [vmem:[%s0 + $0x48] sm:$0xff]
    %v39 = vld [vmem:[%s0 + $0x50] sm:$0xff]
    %v40 = vld [vmem:[%s0 + $0x58] sm:$0xff]
    %v41 = vld [vmem:[%s0 + $0x60] sm:$0x1]
    %v42 = vld [vmem:[%s0 + $0x68] sm:$0x1]
    %v43 = vld [vmem:[%s0 + $0x70] sm:$0x1]
    %v44 = vld [vmem:[%s0 + $0x78] sm:$0x1]
    %v45 = vld [vmem:[%s0 + $0x80] sm:$0xff]
    %v46 = vld [vmem:[%s0 + $0x88] sm:$0xff]
    %v47 = vld [vmem:[%s0 + $0x90] sm:$0xff]
    %v48 = vld [vmem:[%s0 + $0x98] sm:$0xff]
    %v49 = vld [vmem:[%s0 + $0xa0] sm:$0x1]
    %v50 = vld [vmem:[%s0 + $0xa8] sm:$0x1]
    %v51 = vld [vmem:[%s0 + $0xb0] sm:$0x1]
    %v52 = vld [vmem:[%s0 + $0xb8] sm:$0x1]
    %v53 = vld [vmem:[%s0 + $0xc0] sm:$0xff]
    %v54 = vld [vmem:[%s0 + $0xc8] sm:$0xff]
    %v55 = vld [vmem:[%s0 + $0xd0] sm:$0xff]
    %v56 = vld [vmem:[%s0 + $0xd8] sm:$0xff]
    %v57 = vld [vmem:[%s0 + $0xe0] sm:$0x1]
    %v58 = vld [vmem:[%s0 + $0xe8] sm:$0x1]
    %v59 = vld [vmem:[%s0 + $0xf0] sm:$0x1]
    %v60 = vld [vmem:[%s0 + $0xf8] sm:$0x1]
    %v61 = vld [vmem:[%s0 + $0x100] sm:$0xff]
    %v62 = vld [vmem:[%s0 + $0x108] sm:$0xff]
    %v63 = vld [vmem:[%s0 + $0x110] sm:$0xff]
    %v64 = vld [vmem:[%s0 + $0x118] sm:$0xff]
    %v65 = vld [vmem:[%s0 + $0x120] sm:$0x1]
    %v66 = vld [vmem:[%s0 + $0x128] sm:$0x1]
    %v67 = vld [vmem:[%s0 + $0x130] sm:$0x1]
    %v68 = vld [vmem:[%s0 + $0x138] sm:$0x1]
    %v69 = vld [vmem:[%s0 + $0x140] sm:$0xff]
    %v70 = vld [vmem:[%s0 + $0x148] sm:$0xff]
    %v71 = vld [vmem:[%s0 + $0x150] sm:$0xff]
    %v72 = vld [vmem:[%s0 + $0x158] sm:$0xff]
    %v73 = vld [vmem:[%s0 + $0x160] sm:$0x1]
    %v74 = vld [vmem:[%s0 + $0x168] sm:$0x1]
    %v75 = vld [vmem:[%s0 + $0x170] sm:$0x1]
    %v76 = vld [vmem:[%s0 + $0x178] sm:$0x1]
    %v77 = vld [vmem:[%s0 + $0x180] sm:$0xff]
    %v78 = vld [vmem:[%s0 + $0x188] sm:$0xff]
    %v79 = vld [vmem:[%s0 + $0x190] sm:$0xff]
    %v80 = vld [vmem:[%s0 + $0x198] sm:$0xff]
    %v81 = vld [vmem:[%s0 + $0x1a0] sm:$0x1]
    %v82 = vld [vmem:[%s0 + $0x1a8] sm:$0x1]
    %v83 = vld [vmem:[%s0 + $0x1b0] sm:$0x1]
    %v84 = vld [vmem:[%s0 + $0x1b8] sm:$0x1]
    %v85 = vld [vmem:[%s0 + $0x1c0] sm:$0xff]
    %v86 = vld [vmem:[%s0 + $0x1c8] sm:$0xff]
    %v87 = vld [vmem:[%s0 + $0x1d0] sm:$0xff]
    %v88 = vld [vmem:[%s0 + $0x1d8] sm:$0xff]
    %v89 = vld [vmem:[%s0 + $0x1e0] sm:$0x1]
    %v90 = vld [vmem:[%s0 + $0x1e8] sm:$0x1]
    %v91 = vld [vmem:[%s0 + $0x1f0] sm:$0x1]
    %v92 = vld [vmem:[%s0 + $0x1f8] sm:$0x1]
    %v93 = vld [vmem:[%s0 + $0x200] sm:$0xff]
    %v94 = vld [vmem:[%s0 + $0x208] sm:$0xff]
    %v95 = vld [vmem:[%s0 + $0x210] sm:$0xff]
    %v96 = vld [vmem:[%s0 + $0x218] sm:$0xff]
    %v97 = vld [vmem:[%s0 + $0x220] sm:$0x1]
    %v98 = vld [vmem:[%s0 + $0x228] sm:$0x1]
    %v99 = vld [vmem:[%s0 + $0x230] sm:$0x1]
    %v100 = vld [vmem:[%s0 + $0x238] sm:$0x1]
    %v101 = vld [vmem:[%s0 + $0x240] sm:$0xff]
    %v102 = vld [vmem:[%s0 + $0x248] sm:$0xff]
    %v103 = vld [vmem:[%s0 + $0x250] sm:$0xff]
    %v104 = vld [vmem:[%s0 + $0x258] sm:$0xff]
    %v105 = vld [vmem:[%s0 + $0x260] sm:$0x1]
    %v106 = vld [vmem:[%s0 + $0x268] sm:$0x1]
    %v107 = vld [vmem:[%s0 + $0x270] sm:$0x1]
    %v108 = vld [vmem:[%s0 + $0x278] sm:$0x1]
    %v109 = vld [vmem:[%s0 + $0x280] sm:$0xff]
    %v110 = vld [vmem:[%s0 + $0x288] sm:$0xff]
    %v111 = vld [vmem:[%s0 + $0x290] sm:$0xff]
    %v112 = vld [vmem:[%s0 + $0x298] sm:$0xff]
    %v113 = vld [vmem:[%s0 + $0x2a0] sm:$0x1]
    %v114 = vld [vmem:[%s0 + $0x2a8] sm:$0x1]
    %v115 = vld [vmem:[%s0 + $0x2b0] sm:$0x1]
    %v116 = vld [vmem:[%s0 + $0x2b8] sm:$0x1]
    %v117 = vld [vmem:[%s0 + $0x2c0] sm:$0xff]
    %v118 = vld [vmem:[%s0 + $0x2c8] sm:$0xff]
    %v119 = vld [vmem:[%s0 + $0x2d0] sm:$0xff]
    %v120 = vld [vmem:[%s0 + $0x2d8] sm:$0xff]
    %v121 = vld [vmem:[%s0 + $0x2e0] sm:$0x1]
    %v122 = vld [vmem:[%s0 + $0x2e8] sm:$0x1]
    %v123 = vld [vmem:[%s0 + $0x2f0] sm:$0x1]
    %v124 = vld [vmem:[%s0 + $0x2f8] sm:$0x1]
    %v125 = vld [vmem:[%s0 + $0x300] sm:$0xff]
    %v126 = vld [vmem:[%s0 + $0x308] sm:$0xff]
    %v127 = vld [vmem:[%s0 + $0x310] sm:$0xff]
    %v128 = vld [vmem:[%s0 + $0x318] sm:$0xff]
    %v129 = vld [vmem:[%s0 + $0x320] sm:$0x1]
    %v130 = vld [vmem:[%s0 + $0x328] sm:$0x1]
    %v131 = vld [vmem:[%s0 + $0x330] sm:$0x1]
    %v132 = vld [vmem:[%s0 + $0x338] sm:$0x1]
    %v133 = vld [vmem:[%s0 + $0x340] sm:$0xff]
    %v134 = vld [vmem:[%s0 + $0x348] sm:$0xff]
    %v135 = vld [vmem:[%s0 + $0x350] sm:$0xff]
    %v136 = vld [vmem:[%s0 + $0x358] sm:$0xff]
    %v137 = vld [vmem:[%s0 + $0x360] sm:$0x1]
    %v138 = vld [vmem:[%s0 + $0x368] sm:$0x1]
    %v139 = vld [vmem:[%s0 + $0x370] sm:$0x1]
    %v140 = vld [vmem:[%s0 + $0x378] sm:$0x1]
    %v141 = vld [vmem:[%s0 + $0x380] sm:$0xff]
    %v142 = vld [vmem:[%s0 + $0x388] sm:$0xff]
    %v143 = vld [vmem:[%s0 + $0x390] sm:$0xff]
    %v144 = vld [vmem:[%s0 + $0x398] sm:$0xff]
    %v145 = vld [vmem:[%s0 + $0x3a0] sm:$0x1]
    %v146 = vld [vmem:[%s0 + $0x3a8] sm:$0x1]
    %v147 = vld [vmem:[%s0 + $0x3b0] sm:$0x1]
    %v148 = vld [vmem:[%s0 + $0x3b8] sm:$0x1]
    %v149 = vld [vmem:[%s0 + $0x3c0] sm:$0xff]
    %v150 = vld [vmem:[%s0 + $0x3c8] sm:$0xff]
    %v151 = vld [vmem:[%s0 + $0x3d0] sm:$0xff]
    %v152 = vld [vmem:[%s0 + $0x3d8] sm:$0xff]
    %v153 = vld [vmem:[%s0 + $0x3e0] sm:$0x1]
    %v154 = vld [vmem:[%s0 + $0x3e8] sm:$0x1]
    %v155 = vld [vmem:[%s0 + $0x3f0] sm:$0x1]
    %v156 = vld [vmem:[%s0 + $0x3f8] sm:$0x1]
    %v157 = vld [vmem:[%s0 + $0x400] sm:$0xff]
    %v158 = vld [vmem:[%s0 + $0x408] sm:$0xff]
    %v159 = vld [vmem:[%s0 + $0x410] sm:$0xff]
    %v160 = vld [vmem:[%s0 + $0x418] sm:$0xff]
    %v161 = vld [vmem:[%s0 + $0x420] sm:$0x1]
    %v162 = vld [vmem:[%s0 + $0x428] sm:$0x1]
    %v163 = vld [vmem:[%s0 + $0x430] sm:$0x1]
    %v164 = vld [vmem:[%s0 + $0x438] sm:$0x1]
    %v165 = vld [vmem:[%s0 + $0x440] sm:$0xff]
    %v166 = vld [vmem:[%s0 + $0x448] sm:$0xff]
    %v167 = vld [vmem:[%s0 + $0x450] sm:$0xff]
    %v168 = vld [vmem:[%s0 + $0x458] sm:$0xff]
    %v169 = vld [vmem:[%s0 + $0x460] sm:$0x1]
    %v170 = vld [vmem:[%s0 + $0x468] sm:$0x1]
    %v171 = vld [vmem:[%s0 + $0x470] sm:$0x1]
    %v172 = vld [vmem:[%s0 + $0x478] sm:$0x1]
    %v173 = vld [vmem:[%s1] sm:$0xf]
    %v175 = vlaneseq
    %v176 = vshrl.u32 %v175, 7
    %v177 = vsub.s32 0, %v176
    %v178 = vrot.slane %v173, %v177
    %v179 = vlaneseq
    %v180 = vshrl.u32 %v179, 7
    %v181 = vsub.s32 1, %v180
    %v182 = vrot.slane %v173, %v181
    %v183 = vlaneseq
    %v184 = vshrl.u32 %v183, 7
    %v185 = vsub.s32 2, %v184
    %v186 = vrot.slane %v173, %v185
    %v187 = vlaneseq
    %v188 = vshrl.u32 %v187, 7
    %v189 = vsub.s32 3, %v188
    %v190 = vrot.slane %v173, %v189
    %v195 = vmul.f32 %v29, %v178
    %v196 = vmul.f32 %v30, %v182
    %v197 = vmul.f32 %v31, %v186
    %v198 = vmul.f32 %v32, %v190
    %v199 = vmul.f32 %v33, %v178
    %v200 = vmul.f32 %v34, %v182
    %v201 = vmul.f32 %v35, %v186
    %v202 = vmul.f32 %v36, %v190
    %v203 = vmul.f32 %v37, %v178
    %v204 = vmul.f32 %v38, %v182
    %v205 = vmul.f32 %v39, %v186
    %v206 = vmul.f32 %v40, %v190
    %v207 = vmul.f32 %v41, %v178
    %v208 = vmul.f32 %v42, %v182
    %v209 = vmul.f32 %v43, %v186
    %v210 = vmul.f32 %v44, %v190
    %v211 = vmul.f32 %v45, %v178
    %v212 = vmul.f32 %v46, %v182
    %v213 = vmul.f32 %v47, %v186
    %v214 = vmul.f32 %v48, %v190
    %v215 = vmul.f32 %v49, %v178
    %v216 = vmul.f32 %v50, %v182
    %v217 = vmul.f32 %v51, %v186
    %v218 = vmul.f32 %v52, %v190
    %v219 = vmul.f32 %v53, %v178
    %v220 = vmul.f32 %v54, %v182
    %v221 = vmul.f32 %v55, %v186
    %v222 = vmul.f32 %v56, %v190
    %v223 = vmul.f32 %v57, %v178
    %v224 = vmul.f32 %v58, %v182
    %v225 = vmul.f32 %v59, %v186
    %v226 = vmul.f32 %v60, %v190
    %v227 = vmul.f32 %v61, %v178
    %v228 = vmul.f32 %v62, %v182
    %v229 = vmul.f32 %v63, %v186
    %v230 = vmul.f32 %v64, %v190
    %v231 = vmul.f32 %v65, %v178
    %v232 = vmul.f32 %v66, %v182
    %v233 = vmul.f32 %v67, %v186
    %v234 = vmul.f32 %v68, %v190
    %v235 = vmul.f32 %v69, %v178
    %v236 = vmul.f32 %v70, %v182
    %v237 = vmul.f32 %v71, %v186
    %v238 = vmul.f32 %v72, %v190
    %v239 = vmul.f32 %v73, %v178
    %v240 = vmul.f32 %v74, %v182
    %v241 = vmul.f32 %v75, %v186
    %v242 = vmul.f32 %v76, %v190
    %v243 = vmul.f32 %v77, %v178
    %v244 = vmul.f32 %v78, %v182
    %v245 = vmul.f32 %v79, %v186
    %v246 = vmul.f32 %v80, %v190
    %v247 = vmul.f32 %v81, %v178
    %v248 = vmul.f32 %v82, %v182
    %v249 = vmul.f32 %v83, %v186
    %v250 = vmul.f32 %v84, %v190
    %v251 = vmul.f32 %v85, %v178
    %v252 = vmul.f32 %v86, %v182
    %v253 = vmul.f32 %v87, %v186
    %v254 = vmul.f32 %v88, %v190
    %v255 = vmul.f32 %v89, %v178
    %v256 = vmul.f32 %v90, %v182
    %v257 = vmul.f32 %v91, %v186
    %v258 = vmul.f32 %v92, %v190
    %v259 = vmul.f32 %v93, %v178
    %v260 = vmul.f32 %v94, %v182
    %v261 = vmul.f32 %v95, %v186
    %v262 = vmul.f32 %v96, %v190
    %v263 = vmul.f32 %v97, %v178
    %v264 = vmul.f32 %v98, %v182
    %v265 = vmul.f32 %v99, %v186
    %v266 = vmul.f32 %v100, %v190
    %v267 = vmul.f32 %v101, %v178
    %v268 = vmul.f32 %v102, %v182
    %v269 = vmul.f32 %v103, %v186
    %v270 = vmul.f32 %v104, %v190
    %v271 = vmul.f32 %v105, %v178
    %v272 = vmul.f32 %v106, %v182
    %v273 = vmul.f32 %v107, %v186
    %v274 = vmul.f32 %v108, %v190
    %v275 = vmul.f32 %v109, %v178
    %v276 = vmul.f32 %v110, %v182
    %v277 = vmul.f32 %v111, %v186
    %v278 = vmul.f32 %v112, %v190
    %v279 = vmul.f32 %v113, %v178
    %v280 = vmul.f32 %v114, %v182
    %v281 = vmul.f32 %v115, %v186
    %v282 = vmul.f32 %v116, %v190
    %v283 = vmul.f32 %v117, %v178
    %v284 = vmul.f32 %v118, %v182
    %v285 = vmul.f32 %v119, %v186
    %v286 = vmul.f32 %v120, %v190
    %v287 = vmul.f32 %v121, %v178
    %v288 = vmul.f32 %v122, %v182
    %v289 = vmul.f32 %v123, %v186
    %v290 = vmul.f32 %v124, %v190
    %v291 = vmul.f32 %v125, %v178
    %v292 = vmul.f32 %v126, %v182
    %v293 = vmul.f32 %v127, %v186
    %v294 = vmul.f32 %v128, %v190
    %v295 = vmul.f32 %v129, %v178
    %v296 = vmul.f32 %v130, %v182
    %v297 = vmul.f32 %v131, %v186
    %v298 = vmul.f32 %v132, %v190
    %v299 = vmul.f32 %v133, %v178
    %v300 = vmul.f32 %v134, %v182
    %v301 = vmul.f32 %v135, %v186
    %v302 = vmul.f32 %v136, %v190
    %v303 = vmul.f32 %v137, %v178
    %v304 = vmul.f32 %v138, %v182
    %v305 = vmul.f32 %v139, %v186
    %v306 = vmul.f32 %v140, %v190
    %v307 = vmul.f32 %v141, %v178
    %v308 = vmul.f32 %v142, %v182
    %v309 = vmul.f32 %v143, %v186
    %v310 = vmul.f32 %v144, %v190
    %v311 = vmul.f32 %v145, %v178
    %v312 = vmul.f32 %v146, %v182
    %v313 = vmul.f32 %v147, %v186
    %v314 = vmul.f32 %v148, %v190
    %v315 = vmul.f32 %v149, %v178
    %v316 = vmul.f32 %v150, %v182
    %v317 = vmul.f32 %v151, %v186
    %v318 = vmul.f32 %v152, %v190
    %v319 = vmul.f32 %v153, %v178
    %v320 = vmul.f32 %v154, %v182
    %v321 = vmul.f32 %v155, %v186
    %v322 = vmul.f32 %v156, %v190
    %v323 = vmul.f32 %v157, %v178
    %v324 = vmul.f32 %v158, %v182
    %v325 = vmul.f32 %v159, %v186
    %v326 = vmul.f32 %v160, %v190
    %v327 = vmul.f32 %v161, %v178
    %v328 = vmul.f32 %v162, %v182
    %v329 = vmul.f32 %v163, %v186
    %v330 = vmul.f32 %v164, %v190
    %v331 = vmul.f32 %v165, %v178
    %v332 = vmul.f32 %v166, %v182
    %v333 = vmul.f32 %v167, %v186
    %v334 = vmul.f32 %v168, %v190
    %v335 = vmul.f32 %v169, %v178
    %v336 = vmul.f32 %v170, %v182
    %v337 = vmul.f32 %v171, %v186
    %v338 = vmul.f32 %v172, %v190
    %v339 = vadd.f32 %v195, %v196
    %v340 = vadd.f32 %v339, %v197
    %v341 = vadd.f32 %v340, %v198
    %342 = vadd.xlane.f32.xlu0 %v341
    %v343 = vpop.xlane.xlu0 %342
    %vm344 = vcmask 1040384
    %v345 = vsel %vm344, %v199, 0.0
    %v346 = vsel %vm344, %v200, 0.0
    %v347 = vadd.f32 %v345, %v346
    %v348 = vsel %vm344, %v201, 0.0
    %v349 = vadd.f32 %v347, %v348
    %v350 = vsel %vm344, %v202, 0.0
    %v351 = vadd.f32 %v349, %v350
    %352 = vadd.xlane.f32.xlu0 %v351
    %v353 = vpop.xlane.xlu0 %352
    %v354 = vadd.f32 %v203, %v204
    %v355 = vadd.f32 %v354, %v205
    %v356 = vadd.f32 %v355, %v206
    %357 = vadd.xlane.f32.xlu0 %v356
    %v358 = vpop.xlane.xlu0 %357
    %v359 = vsel %vm344, %v207, 0.0
    %v360 = vsel %vm344, %v208, 0.0
    %v361 = vadd.f32 %v359, %v360
    %v362 = vsel %vm344, %v209, 0.0
    %v363 = vadd.f32 %v361, %v362
    %v364 = vsel %vm344, %v210, 0.0
    %v365 = vadd.f32 %v363, %v364
    %366 = vadd.xlane.f32.xlu0 %v365
    %v367 = vpop.xlane.xlu0 %366
    %v368 = vadd.f32 %v211, %v212
    %v369 = vadd.f32 %v368, %v213
    %v370 = vadd.f32 %v369, %v214
    %371 = vadd.xlane.f32.xlu0 %v370
    %v372 = vpop.xlane.xlu0 %371
    %v373 = vsel %vm344, %v215, 0.0
    %v374 = vsel %vm344, %v216, 0.0
    %v375 = vadd.f32 %v373, %v374
    %v376 = vsel %vm344, %v217, 0.0
    %v377 = vadd.f32 %v375, %v376
    %v378 = vsel %vm344, %v218, 0.0
    %v379 = vadd.f32 %v377, %v378
    %380 = vadd.xlane.f32.xlu0 %v379
    %v381 = vpop.xlane.xlu0 %380
    %v382 = vadd.f32 %v219, %v220
    %v383 = vadd.f32 %v382, %v221
    %v384 = vadd.f32 %v383, %v222
    %385 = vadd.xlane.f32.xlu0 %v384
    %v386 = vpop.xlane.xlu0 %385
    %v387 = vsel %vm344, %v223, 0.0
    %v388 = vsel %vm344, %v224, 0.0
    %v389 = vadd.f32 %v387, %v388
    %v390 = vsel %vm344, %v225, 0.0
    %v391 = vadd.f32 %v389, %v390
    %v392 = vsel %vm344, %v226, 0.0
    %v393 = vadd.f32 %v391, %v392
    %394 = vadd.xlane.f32.xlu0 %v393
    %v395 = vpop.xlane.xlu0 %394
    %v396 = vadd.f32 %v227, %v228
    %v397 = vadd.f32 %v396, %v229
    %v398 = vadd.f32 %v397, %v230
    %399 = vadd.xlane.f32.xlu0 %v398
    %v400 = vpop.xlane.xlu0 %399
    %v401 = vsel %vm344, %v231, 0.0
    %v402 = vsel %vm344, %v232, 0.0
    %v403 = vadd.f32 %v401, %v402
    %v404 = vsel %vm344, %v233, 0.0
    %v405 = vadd.f32 %v403, %v404
    %v406 = vsel %vm344, %v234, 0.0
    %v407 = vadd.f32 %v405, %v406
    %408 = vadd.xlane.f32.xlu0 %v407
    %v409 = vpop.xlane.xlu0 %408
    %v410 = vadd.f32 %v235, %v236
    %v411 = vadd.f32 %v410, %v237
    %v412 = vadd.f32 %v411, %v238
    %413 = vadd.xlane.f32.xlu0 %v412
    %v414 = vpop.xlane.xlu0 %413
    %v415 = vsel %vm344, %v239, 0.0
    %v416 = vsel %vm344, %v240, 0.0
    %v417 = vadd.f32 %v415, %v416
    %v418 = vsel %vm344, %v241, 0.0
    %v419 = vadd.f32 %v417, %v418
    %v420 = vsel %vm344, %v242, 0.0
    %v421 = vadd.f32 %v419, %v420
    %422 = vadd.xlane.f32.xlu0 %v421
    %v423 = vpop.xlane.xlu0 %422
    %v424 = vadd.f32 %v243, %v244
    %v425 = vadd.f32 %v424, %v245
    %v426 = vadd.f32 %v425, %v246
    %427 = vadd.xlane.f32.xlu0 %v426
    %v428 = vpop.xlane.xlu0 %427
    %v429 = vsel %vm344, %v247, 0.0
    %v430 = vsel %vm344, %v248, 0.0
    %v431 = vadd.f32 %v429, %v430
    %v432 = vsel %vm344, %v249, 0.0
    %v433 = vadd.f32 %v431, %v432
    %v434 = vsel %vm344, %v250, 0.0
    %v435 = vadd.f32 %v433, %v434
    %436 = vadd.xlane.f32.xlu0 %v435
    %v437 = vpop.xlane.xlu0 %436
    %v438 = vadd.f32 %v251, %v252
    %v439 = vadd.f32 %v438, %v253
    %v440 = vadd.f32 %v439, %v254
    %441 = vadd.xlane.f32.xlu0 %v440
    %v442 = vpop.xlane.xlu0 %441
    %v443 = vsel %vm344, %v255, 0.0
    %v444 = vsel %vm344, %v256, 0.0
    %v445 = vadd.f32 %v443, %v444
    %v446 = vsel %vm344, %v257, 0.0
    %v447 = vadd.f32 %v445, %v446
    %v448 = vsel %vm344, %v258, 0.0
    %v449 = vadd.f32 %v447, %v448
    %450 = vadd.xlane.f32.xlu0 %v449
    %v451 = vpop.xlane.xlu0 %450
    %v452 = vadd.f32 %v259, %v260
    %v453 = vadd.f32 %v452, %v261
    %v454 = vadd.f32 %v453, %v262
    %455 = vadd.xlane.f32.xlu0 %v454
    %v456 = vpop.xlane.xlu0 %455
    %v457 = vsel %vm344, %v263, 0.0
    %v458 = vsel %vm344, %v264, 0.0
    %v459 = vadd.f32 %v457, %v458
    %v460 = vsel %vm344, %v265, 0.0
    %v461 = vadd.f32 %v459, %v460
    %v462 = vsel %vm344, %v266, 0.0
    %v463 = vadd.f32 %v461, %v462
    %464 = vadd.xlane.f32.xlu0 %v463
    %v465 = vpop.xlane.xlu0 %464
    %v466 = vadd.f32 %v267, %v268
    %v467 = vadd.f32 %v466, %v269
    %v468 = vadd.f32 %v467, %v270
    %469 = vadd.xlane.f32.xlu0 %v468
    %v470 = vpop.xlane.xlu0 %469
    %v471 = vsel %vm344, %v271, 0.0
    %v472 = vsel %vm344, %v272, 0.0
    %v473 = vadd.f32 %v471, %v472
    %v474 = vsel %vm344, %v273, 0.0
    %v475 = vadd.f32 %v473, %v474
    %v476 = vsel %vm344, %v274, 0.0
    %v477 = vadd.f32 %v475, %v476
    %478 = vadd.xlane.f32.xlu0 %v477
    %v479 = vpop.xlane.xlu0 %478
    %v480 = vadd.f32 %v275, %v276
    %v481 = vadd.f32 %v480, %v277
    %v482 = vadd.f32 %v481, %v278
    %483 = vadd.xlane.f32.xlu0 %v482
    %v484 = vpop.xlane.xlu0 %483
    %v485 = vsel %vm344, %v279, 0.0
    %v486 = vsel %vm344, %v280, 0.0
    %v487 = vadd.f32 %v485, %v486
    %v488 = vsel %vm344, %v281, 0.0
    %v489 = vadd.f32 %v487, %v488
    %v490 = vsel %vm344, %v282, 0.0
    %v491 = vadd.f32 %v489, %v490
    %492 = vadd.xlane.f32.xlu0 %v491
    %v493 = vpop.xlane.xlu0 %492
    %v494 = vadd.f32 %v283, %v284
    %v495 = vadd.f32 %v494, %v285
    %v496 = vadd.f32 %v495, %v286
    %497 = vadd.xlane.f32.xlu0 %v496
    %v498 = vpop.xlane.xlu0 %497
    %v499 = vsel %vm344, %v287, 0.0
    %v500 = vsel %vm344, %v288, 0.0
    %v501 = vadd.f32 %v499, %v500
    %v502 = vsel %vm344, %v289, 0.0
    %v503 = vadd.f32 %v501, %v502
    %v504 = vsel %vm344, %v290, 0.0
    %v505 = vadd.f32 %v503, %v504
    %506 = vadd.xlane.f32.xlu0 %v505
    %v507 = vpop.xlane.xlu0 %506
    %v508 = vadd.f32 %v291, %v292
    %v509 = vadd.f32 %v508, %v293
    %v510 = vadd.f32 %v509, %v294
    %511 = vadd.xlane.f32.xlu0 %v510
    %v512 = vpop.xlane.xlu0 %511
    %v513 = vsel %vm344, %v295, 0.0
    %v514 = vsel %vm344, %v296, 0.0
    %v515 = vadd.f32 %v513, %v514
    %v516 = vsel %vm344, %v297, 0.0
    %v517 = vadd.f32 %v515, %v516
    %v518 = vsel %vm344, %v298, 0.0
    %v519 = vadd.f32 %v517, %v518
    %520 = vadd.xlane.f32.xlu0 %v519
    %v521 = vpop.xlane.xlu0 %520
    %v522 = vadd.f32 %v299, %v300
    %v523 = vadd.f32 %v522, %v301
    %v524 = vadd.f32 %v523, %v302
    %525 = vadd.xlane.f32.xlu0 %v524
    %v526 = vpop.xlane.xlu0 %525
    %v527 = vsel %vm344, %v303, 0.0
    %v528 = vsel %vm344, %v304, 0.0
    %v529 = vadd.f32 %v527, %v528
    %v530 = vsel %vm344, %v305, 0.0
    %v531 = vadd.f32 %v529, %v530
    %v532 = vsel %vm344, %v306, 0.0
    %v533 = vadd.f32 %v531, %v532
    %534 = vadd.xlane.f32.xlu0 %v533
    %v535 = vpop.xlane.xlu0 %534
    %v536 = vadd.f32 %v307, %v308
    %v537 = vadd.f32 %v536, %v309
    %v538 = vadd.f32 %v537, %v310
    %539 = vadd.xlane.f32.xlu0 %v538
    %v540 = vpop.xlane.xlu0 %539
    %v541 = vsel %vm344, %v311, 0.0
    %v542 = vsel %vm344, %v312, 0.0
    %v543 = vadd.f32 %v541, %v542
    %v544 = vsel %vm344, %v313, 0.0
    %v545 = vadd.f32 %v543, %v544
    %v546 = vsel %vm344, %v314, 0.0
    %v547 = vadd.f32 %v545, %v546
    %548 = vadd.xlane.f32.xlu0 %v547
    %v549 = vpop.xlane.xlu0 %548
    %v550 = vadd.f32 %v315, %v316
    %v551 = vadd.f32 %v550, %v317
    %v552 = vadd.f32 %v551, %v318
    %553 = vadd.xlane.f32.xlu0 %v552
    %v554 = vpop.xlane.xlu0 %553
    %v555 = vsel %vm344, %v319, 0.0
    %v556 = vsel %vm344, %v320, 0.0
    %v557 = vadd.f32 %v555, %v556
    %v558 = vsel %vm344, %v321, 0.0
    %v559 = vadd.f32 %v557, %v558
    %v560 = vsel %vm344, %v322, 0.0
    %v561 = vadd.f32 %v559, %v560
    %562 = vadd.xlane.f32.xlu0 %v561
    %v563 = vpop.xlane.xlu0 %562
    %v564 = vadd.f32 %v323, %v324
    %v565 = vadd.f32 %v564, %v325
    %v566 = vadd.f32 %v565, %v326
    %567 = vadd.xlane.f32.xlu0 %v566
    %v568 = vpop.xlane.xlu0 %567
    %v569 = vsel %vm344, %v327, 0.0
    %v570 = vsel %vm344, %v328, 0.0
    %v571 = vadd.f32 %v569, %v570
    %v572 = vsel %vm344, %v329, 0.0
    %v573 = vadd.f32 %v571, %v572
    %v574 = vsel %vm344, %v330, 0.0
    %v575 = vadd.f32 %v573, %v574
    %576 = vadd.xlane.f32.xlu0 %v575
    %v577 = vpop.xlane.xlu0 %576
    %v578 = vadd.f32 %v331, %v332
    %v579 = vadd.f32 %v578, %v333
    %v580 = vadd.f32 %v579, %v334
    %581 = vadd.xlane.f32.xlu0 %v580
    %v582 = vpop.xlane.xlu0 %581
    %v583 = vsel %vm344, %v335, 0.0
    %v584 = vsel %vm344, %v336, 0.0
    %v585 = vadd.f32 %v583, %v584
    %v586 = vsel %vm344, %v337, 0.0
    %v587 = vadd.f32 %v585, %v586
    %v588 = vsel %vm344, %v338, 0.0
    %v589 = vadd.f32 %v587, %v588
    %590 = vadd.xlane.f32.xlu0 %v589
    %v591 = vpop.xlane.xlu0 %590
    %s592 = sld [smem:[#allocation2]]
    %v593 = vstv %s592
    %v594 = vadd.f32 %v343, %v593
    %v595 = vadd.f32 %v353, %v593
    %v596 = vadd.f32 %v358, %v593
    %v597 = vadd.f32 %v367, %v593
    %v598 = vadd.f32 %v372, %v593
    %v599 = vadd.f32 %v381, %v593
    %v600 = vadd.f32 %v386, %v593
    %v601 = vadd.f32 %v395, %v593
    %v602 = vadd.f32 %v400, %v593
    %v603 = vadd.f32 %v409, %v593
    %v604 = vadd.f32 %v414, %v593
    %v605 = vadd.f32 %v423, %v593
    %v606 = vadd.f32 %v428, %v593
    %v607 = vadd.f32 %v437, %v593
    %v608 = vadd.f32 %v442, %v593
    %v609 = vadd.f32 %v451, %v593
    %v610 = vadd.f32 %v456, %v593
    %v611 = vadd.f32 %v465, %v593
    %v612 = vadd.f32 %v470, %v593
    %v613 = vadd.f32 %v479, %v593
    %v614 = vadd.f32 %v484, %v593
    %v615 = vadd.f32 %v493, %v593
    %v616 = vadd.f32 %v498, %v593
    %v617 = vadd.f32 %v507, %v593
    %v618 = vadd.f32 %v512, %v593
    %v619 = vadd.f32 %v521, %v593
    %v620 = vadd.f32 %v526, %v593
    %v621 = vadd.f32 %v535, %v593
    %v622 = vadd.f32 %v540, %v593
    %v623 = vadd.f32 %v549, %v593
    %v624 = vadd.f32 %v554, %v593
    %v625 = vadd.f32 %v563, %v593
    %v626 = vadd.f32 %v568, %v593
    %v627 = vadd.f32 %v577, %v593
    %v628 = vadd.f32 %v582, %v593
    %v629 = vadd.f32 %v591, %v593
    %v630 = vmax.f32 %v594, 0.0
    %v631 = vmax.f32 %v595, 0.0
    %v632 = vmax.f32 %v596, 0.0
    %v633 = vmax.f32 %v597, 0.0
    %v634 = vmax.f32 %v598, 0.0
    %v635 = vmax.f32 %v599, 0.0
    %v636 = vmax.f32 %v600, 0.0
    %v637 = vmax.f32 %v601, 0.0
    %v638 = vmax.f32 %v602, 0.0
    %v639 = vmax.f32 %v603, 0.0
    %v640 = vmax.f32 %v604, 0.0
    %v641 = vmax.f32 %v605, 0.0
    %v642 = vmax.f32 %v606, 0.0
    %v643 = vmax.f32 %v607, 0.0
    %v644 = vmax.f32 %v608, 0.0
    %v645 = vmax.f32 %v609, 0.0
    %v646 = vmax.f32 %v610, 0.0
    %v647 = vmax.f32 %v611, 0.0
    %v648 = vmax.f32 %v612, 0.0
    %v649 = vmax.f32 %v613, 0.0
    %v650 = vmax.f32 %v614, 0.0
    %v651 = vmax.f32 %v615, 0.0
    %v652 = vmax.f32 %v616, 0.0
    %v653 = vmax.f32 %v617, 0.0
    %v654 = vmax.f32 %v618, 0.0
    %v655 = vmax.f32 %v619, 0.0
    %v656 = vmax.f32 %v620, 0.0
    %v657 = vmax.f32 %v621, 0.0
    %v658 = vmax.f32 %v622, 0.0
    %v659 = vmax.f32 %v623, 0.0
    %v660 = vmax.f32 %v624, 0.0
    %v661 = vmax.f32 %v625, 0.0
    %v662 = vmax.f32 %v626, 0.0
    %v663 = vmax.f32 %v627, 0.0
    %v664 = vmax.f32 %v628, 0.0
    %v665 = vmax.f32 %v629, 0.0
    %v666 = vld [vmem:[%s3] sm:$0x1]
    %v668 = vlaneseq
    %v669 = vshrl.u32 %v668, 7
    %v670 = vsub.s32 0, %v669
    %v671 = vrot.slane %v666, %v670
    %673 = vbcast.lane.b32.xlu0 %v671, 256
    %v674 = vpop.permute.xlu0 %673
    %s676 = sor.u32 256, 8
    %677 = vbcast.lane.b32.xlu0 %v671, %s676
    %v678 = vpop.permute.xlu0 %677
    %v681 = vmul.f32 %v630, %v674
    %v682 = vmul.f32 %v631, %v678
    %v683 = vmul.f32 %v632, %v674
    %v684 = vmul.f32 %v633, %v678
    %v685 = vmul.f32 %v634, %v674
    %v686 = vmul.f32 %v635, %v678
    %v687 = vmul.f32 %v636, %v674
    %v688 = vmul.f32 %v637, %v678
    %v689 = vmul.f32 %v638, %v674
    %v690 = vmul.f32 %v639, %v678
    %v691 = vmul.f32 %v640, %v674
    %v692 = vmul.f32 %v641, %v678
    %v693 = vmul.f32 %v642, %v674
    %v694 = vmul.f32 %v643, %v678
    %v695 = vmul.f32 %v644, %v674
    %v696 = vmul.f32 %v645, %v678
    %v697 = vmul.f32 %v646, %v674
    %v698 = vmul.f32 %v647, %v678
    %v699 = vmul.f32 %v648, %v674
    %v700 = vmul.f32 %v649, %v678
    %v701 = vmul.f32 %v650, %v674
    %v702 = vmul.f32 %v651, %v678
    %v703 = vmul.f32 %v652, %v674
    %v704 = vmul.f32 %v653, %v678
    %v705 = vmul.f32 %v654, %v674
    %v706 = vmul.f32 %v655, %v678
    %v707 = vmul.f32 %v656, %v674
    %v708 = vmul.f32 %v657, %v678
    %v709 = vmul.f32 %v658, %v674
    %v710 = vmul.f32 %v659, %v678
    %v711 = vmul.f32 %v660, %v674
    %v712 = vmul.f32 %v661, %v678
    %v713 = vmul.f32 %v662, %v674
    %v714 = vmul.f32 %v663, %v678
    %v715 = vmul.f32 %v664, %v674
    %v716 = vmul.f32 %v665, %v678
    %753 = vset.pattern.permute.xlu0 0
    %754 = vperm.xlu0 %753, %v681
    %v755 = vpop.permute.xlu0 %754
    %756 = vset.pattern.permute.xlu0 0
    %757 = vperm.xlu0 %756, %v682
    %v758 = vpop.permute.xlu0 %757
    %759 = vset.pattern.permute.xlu0 0
    %760 = vperm.xlu0 %759, %v683
    %v761 = vpop.permute.xlu0 %760
    %762 = vset.pattern.permute.xlu0 0
    %763 = vperm.xlu0 %762, %v684
    %v764 = vpop.permute.xlu0 %763
    %765 = vset.pattern.permute.xlu0 0
    %766 = vperm.xlu0 %765, %v685
    %v767 = vpop.permute.xlu0 %766
    %768 = vset.pattern.permute.xlu0 0
    %769 = vperm.xlu0 %768, %v686
    %v770 = vpop.permute.xlu0 %769
    %771 = vset.pattern.permute.xlu0 0
    %772 = vperm.xlu0 %771, %v687
    %v773 = vpop.permute.xlu0 %772
    %774 = vset.pattern.permute.xlu0 0
    %775 = vperm.xlu0 %774, %v688
    %v776 = vpop.permute.xlu0 %775
    %777 = vset.pattern.permute.xlu0 0
    %778 = vperm.xlu0 %777, %v689
    %v779 = vpop.permute.xlu0 %778
    %780 = vset.pattern.permute.xlu0 0
    %781 = vperm.xlu0 %780, %v690
    %v782 = vpop.permute.xlu0 %781
    %783 = vset.pattern.permute.xlu0 0
    %784 = vperm.xlu0 %783, %v691
    %v785 = vpop.permute.xlu0 %784
    %786 = vset.pattern.permute.xlu0 0
    %787 = vperm.xlu0 %786, %v692
    %v788 = vpop.permute.xlu0 %787
    %789 = vset.pattern.permute.xlu0 0
    %790 = vperm.xlu0 %789, %v693
    %v791 = vpop.permute.xlu0 %790
    %792 = vset.pattern.permute.xlu0 0
    %793 = vperm.xlu0 %792, %v694
    %v794 = vpop.permute.xlu0 %793
    %795 = vset.pattern.permute.xlu0 0
    %796 = vperm.xlu0 %795, %v695
    %v797 = vpop.permute.xlu0 %796
    %798 = vset.pattern.permute.xlu0 0
    %799 = vperm.xlu0 %798, %v696
    %v800 = vpop.permute.xlu0 %799
    %801 = vset.pattern.permute.xlu0 0
    %802 = vperm.xlu0 %801, %v697
    %v803 = vpop.permute.xlu0 %802
    %804 = vset.pattern.permute.xlu0 0
    %805 = vperm.xlu0 %804, %v698
    %v806 = vpop.permute.xlu0 %805
    %807 = vset.pattern.permute.xlu0 0
    %808 = vperm.xlu0 %807, %v699
    %v809 = vpop.permute.xlu0 %808
    %810 = vset.pattern.permute.xlu0 0
    %811 = vperm.xlu0 %810, %v700
    %v812 = vpop.permute.xlu0 %811
    %813 = vset.pattern.permute.xlu0 0
    %814 = vperm.xlu0 %813, %v701
    %v815 = vpop.permute.xlu0 %814
    %816 = vset.pattern.permute.xlu0 0
    %817 = vperm.xlu0 %816, %v702
    %v818 = vpop.permute.xlu0 %817
    %819 = vset.pattern.permute.xlu0 0
    %820 = vperm.xlu0 %819, %v703
    %v821 = vpop.permute.xlu0 %820
    %822 = vset.pattern.permute.xlu0 0
    %823 = vperm.xlu0 %822, %v704
    %v824 = vpop.permute.xlu0 %823
    %825 = vset.pattern.permute.xlu0 0
    %826 = vperm.xlu0 %825, %v705
    %v827 = vpop.permute.xlu0 %826
    %828 = vset.pattern.permute.xlu0 0
    %829 = vperm.xlu0 %828, %v706
    %v830 = vpop.permute.xlu0 %829
    %831 = vset.pattern.permute.xlu0 0
    %832 = vperm.xlu0 %831, %v707
    %v833 = vpop.permute.xlu0 %832
    %834 = vset.pattern.permute.xlu0 0
    %835 = vperm.xlu0 %834, %v708
    %v836 = vpop.permute.xlu0 %835
    %837 = vset.pattern.permute.xlu0 0
    %838 = vperm.xlu0 %837, %v709
    %v839 = vpop.permute.xlu0 %838
    %840 = vset.pattern.permute.xlu0 0
    %841 = vperm.xlu0 %840, %v710
    %v842 = vpop.permute.xlu0 %841
    %843 = vset.pattern.permute.xlu0 0
    %844 = vperm.xlu0 %843, %v711
    %v845 = vpop.permute.xlu0 %844
    %846 = vset.pattern.permute.xlu0 0
    %847 = vperm.xlu0 %846, %v712
    %v848 = vpop.permute.xlu0 %847
    %849 = vset.pattern.permute.xlu0 0
    %850 = vperm.xlu0 %849, %v713
    %v851 = vpop.permute.xlu0 %850
    %852 = vset.pattern.permute.xlu0 0
    %853 = vperm.xlu0 %852, %v714
    %v854 = vpop.permute.xlu0 %853
    %855 = vset.pattern.permute.xlu0 0
    %856 = vperm.xlu0 %855, %v715
    %v857 = vpop.permute.xlu0 %856
    %858 = vset.pattern.permute.xlu0 0
    %859 = vperm.xlu0 %858, %v716
    %v860 = vpop.permute.xlu0 %859
    %v861 = vlaneseq
    %v862 = vand.u32 %v861, 127
    %v863 = vlaneseq
    %v864 = vshrl.u32 %v863, 7
    %v865 = vsub.s32 %v862, %v864
    %v866 = vrot.slane %v755, %v865
    %v867 = vadd.s32 %v862, 4294967288
    %v868 = vlaneseq
    %v869 = vshrl.u32 %v868, 7
    %v870 = vsub.s32 %v867, %v869
    %v871 = vrot.slane %v758, %v870
    %vm872 = vcmask 130112
    %v873 = vsel %vm872, %v871, %v866
    %v874 = vlaneseq
    %v875 = vshrl.u32 %v874, 7
    %v876 = vsub.s32 %v862, %v875
    %v877 = vrot.slane %v761, %v876
    %v878 = vlaneseq
    %v879 = vshrl.u32 %v878, 7
    %v880 = vsub.s32 %v867, %v879
    %v881 = vrot.slane %v764, %v880
    %v882 = vsel %vm872, %v881, %v877
    %v883 = vlaneseq
    %v884 = vshrl.u32 %v883, 7
    %v885 = vsub.s32 %v862, %v884
    %v886 = vrot.slane %v767, %v885
    %v887 = vlaneseq
    %v888 = vshrl.u32 %v887, 7
    %v889 = vsub.s32 %v867, %v888
    %v890 = vrot.slane %v770, %v889
    %v891 = vsel %vm872, %v890, %v886
    %v892 = vlaneseq
    %v893 = vshrl.u32 %v892, 7
    %v894 = vsub.s32 %v862, %v893
    %v895 = vrot.slane %v773, %v894
    %v896 = vlaneseq
    %v897 = vshrl.u32 %v896, 7
    %v898 = vsub.s32 %v867, %v897
    %v899 = vrot.slane %v776, %v898
    %v900 = vsel %vm872, %v899, %v895
    %v901 = vlaneseq
    %v902 = vshrl.u32 %v901, 7
    %v903 = vsub.s32 %v862, %v902
    %v904 = vrot.slane %v779, %v903
    %v905 = vlaneseq
    %v906 = vshrl.u32 %v905, 7
    %v907 = vsub.s32 %v867, %v906
    %v908 = vrot.slane %v782, %v907
    %v909 = vsel %vm872, %v908, %v904
    %v910 = vlaneseq
    %v911 = vshrl.u32 %v910, 7
    %v912 = vsub.s32 %v862, %v911
    %v913 = vrot.slane %v785, %v912
    %v914 = vlaneseq
    %v915 = vshrl.u32 %v914, 7
    %v916 = vsub.s32 %v867, %v915
    %v917 = vrot.slane %v788, %v916
    %v918 = vsel %vm872, %v917, %v913
    %v919 = vlaneseq
    %v920 = vshrl.u32 %v919, 7
    %v921 = vsub.s32 %v862, %v920
    %v922 = vrot.slane %v791, %v921
    %v923 = vlaneseq
    %v924 = vshrl.u32 %v923, 7
    %v925 = vsub.s32 %v867, %v924
    %v926 = vrot.slane %v794, %v925
    %v927 = vsel %vm872, %v926, %v922
    %v928 = vlaneseq
    %v929 = vshrl.u32 %v928, 7
    %v930 = vsub.s32 %v862, %v929
    %v931 = vrot.slane %v797, %v930
    %v932 = vlaneseq
    %v933 = vshrl.u32 %v932, 7
    %v934 = vsub.s32 %v867, %v933
    %v935 = vrot.slane %v800, %v934
    %v936 = vsel %vm872, %v935, %v931
    %v937 = vlaneseq
    %v938 = vshrl.u32 %v937, 7
    %v939 = vsub.s32 %v862, %v938
    %v940 = vrot.slane %v803, %v939
    %v941 = vlaneseq
    %v942 = vshrl.u32 %v941, 7
    %v943 = vsub.s32 %v867, %v942
    %v944 = vrot.slane %v806, %v943
    %v945 = vsel %vm872, %v944, %v940
    %v946 = vlaneseq
    %v947 = vshrl.u32 %v946, 7
    %v948 = vsub.s32 %v862, %v947
    %v949 = vrot.slane %v809, %v948
    %v950 = vlaneseq
    %v951 = vshrl.u32 %v950, 7
    %v952 = vsub.s32 %v867, %v951
    %v953 = vrot.slane %v812, %v952
    %v954 = vsel %vm872, %v953, %v949
    %v955 = vlaneseq
    %v956 = vshrl.u32 %v955, 7
    %v957 = vsub.s32 %v862, %v956
    %v958 = vrot.slane %v815, %v957
    %v959 = vlaneseq
    %v960 = vshrl.u32 %v959, 7
    %v961 = vsub.s32 %v867, %v960
    %v962 = vrot.slane %v818, %v961
    %v963 = vsel %vm872, %v962, %v958
    %v964 = vlaneseq
    %v965 = vshrl.u32 %v964, 7
    %v966 = vsub.s32 %v862, %v965
    %v967 = vrot.slane %v821, %v966
    %v968 = vlaneseq
    %v969 = vshrl.u32 %v968, 7
    %v970 = vsub.s32 %v867, %v969
    %v971 = vrot.slane %v824, %v970
    %v972 = vsel %vm872, %v971, %v967
    %v973 = vlaneseq
    %v974 = vshrl.u32 %v973, 7
    %v975 = vsub.s32 %v862, %v974
    %v976 = vrot.slane %v827, %v975
    %v977 = vlaneseq
    %v978 = vshrl.u32 %v977, 7
    %v979 = vsub.s32 %v867, %v978
    %v980 = vrot.slane %v830, %v979
    %v981 = vsel %vm872, %v980, %v976
    %v982 = vlaneseq
    %v983 = vshrl.u32 %v982, 7
    %v984 = vsub.s32 %v862, %v983
    %v985 = vrot.slane %v833, %v984
    %v986 = vlaneseq
    %v987 = vshrl.u32 %v986, 7
    %v988 = vsub.s32 %v867, %v987
    %v989 = vrot.slane %v836, %v988
    %v990 = vsel %vm872, %v989, %v985
    %v991 = vlaneseq
    %v992 = vshrl.u32 %v991, 7
    %v993 = vsub.s32 %v862, %v992
    %v994 = vrot.slane %v839, %v993
    %v995 = vlaneseq
    %v996 = vshrl.u32 %v995, 7
    %v997 = vsub.s32 %v867, %v996
    %v998 = vrot.slane %v842, %v997
    %v999 = vsel %vm872, %v998, %v994
    %v1000 = vlaneseq
    %v1001 = vshrl.u32 %v1000, 7
    %v1002 = vsub.s32 %v862, %v1001
    %v1003 = vrot.slane %v845, %v1002
    %v1004 = vlaneseq
    %v1005 = vshrl.u32 %v1004, 7
    %v1006 = vsub.s32 %v867, %v1005
    %v1007 = vrot.slane %v848, %v1006
    %v1008 = vsel %vm872, %v1007, %v1003
    %v1009 = vlaneseq
    %v1010 = vshrl.u32 %v1009, 7
    %v1011 = vsub.s32 %v862, %v1010
    %v1012 = vrot.slane %v851, %v1011
    %v1013 = vlaneseq
    %v1014 = vshrl.u32 %v1013, 7
    %v1015 = vsub.s32 %v867, %v1014
    %v1016 = vrot.slane %v854, %v1015
    %v1017 = vsel %vm872, %v1016, %v1012
    %v1018 = vlaneseq
    %v1019 = vshrl.u32 %v1018, 7
    %v1020 = vsub.s32 %v862, %v1019
    %v1021 = vrot.slane %v857, %v1020
    %v1022 = vlaneseq
    %v1023 = vshrl.u32 %v1022, 7
    %v1024 = vsub.s32 %v867, %v1023
    %v1025 = vrot.slane %v860, %v1024
    %v1026 = vsel %vm872, %v1025, %v1021
    %vm1027 = vcmask 1041409
    %v1028 = vsel %vm1027, %v882, %v873
    %vm1029 = vcmask 1042434
    %v1030 = vsel %vm1029, %v891, %v1028
    %vm1031 = vcmask 1043459
    %v1032 = vsel %vm1031, %v900, %v1030
    %vm1033 = vcmask 1044484
    %v1034 = vsel %vm1033, %v909, %v1032
    %vm1035 = vcmask 1045509
    %v1036 = vsel %vm1035, %v918, %v1034
    %vm1037 = vcmask 1046534
    %v1038 = vsel %vm1037, %v927, %v1036
    %vm1039 = vcmask 1047559
    %v1040 = vsel %vm1039, %v936, %v1038
    %v1041 = vsel %vm1027, %v963, %v954
    %v1042 = vsel %vm1029, %v972, %v1041
    %v1043 = vsel %vm1031, %v981, %v1042
    %v1044 = vsel %vm1033, %v990, %v1043
    %v1045 = vsel %vm1035, %v999, %v1044
    %v1046 = vsel %vm1037, %v1008, %v1045
    %v1047 = vsel %vm1039, %v1017, %v1046
    %vm1052 = vcmask 72704
    %v1053 = vsel %vm1052, %v1040, 0.0
    %1054 = vadd.xlane.f32.xlu0 %v1053
    %v1055 = vpop.xlane.xlu0 %1054
    %vm1056 = vcmask 65536
    %v1057 = vsel %vm1056, %v945, 0.0
    %1058 = vadd.xlane.f32.xlu0 %v1057
    %v1059 = vpop.xlane.xlu0 %1058
    %v1060 = vsel %vm1052, %v1047, 0.0
    %1061 = vadd.xlane.f32.xlu0 %v1060
    %v1062 = vpop.xlane.xlu0 %1061
    %v1063 = vsel %vm1056, %v1026, 0.0
    %1064 = vadd.xlane.f32.xlu0 %v1063
    %v1065 = vpop.xlane.xlu0 %1064
    %s1066 = sld [smem:[#allocation3]]
    %v1067 = vstv %s1066
    %v1068 = vadd.f32 %v1055, %v1067
    %v1069 = vadd.f32 %v1059, %v1067
    %v1070 = vadd.f32 %v1062, %v1067
    %v1071 = vadd.f32 %v1065, %v1067
    %v1072 = vmax.f32 %v1068, 0.0
    %v1073 = vmax.f32 %v1069, 0.0
    %v1074 = vmax.f32 %v1070, 0.0
    %v1075 = vmax.f32 %v1071, 0.0
    %v1076 = vld [vmem:[%s5] sm:$0xff]
    %v1077 = vld [vmem:[%s5 + $0x8] sm:$0x1]
    %v1078 = vld [vmem:[%s6] sm:$0x1]
    %v1080 = vlaneseq
    %v1081 = vshrl.u32 %v1080, 7
    %v1082 = vsub.s32 0, %v1081
    %v1083 = vrot.slane %v1078, %v1082
    %v1089 = vlaneseq
    %v1090 = vshrl.u32 %v1089, 7
    %v1091 = vsub.s32 %v862, %v1090
    %v1092 = vrot.slane %v1072, %v1091
    %v1093 = vlaneseq
    %v1094 = vshrl.u32 %v1093, 7
    %v1095 = vsub.s32 %v867, %v1094
    %v1096 = vrot.slane %v1073, %v1095
    %v1097 = vsel %vm872, %v1096, %v1092
    %v1098 = vlaneseq
    %v1099 = vshrl.u32 %v1098, 7
    %v1100 = vsub.s32 %v862, %v1099
    %v1101 = vrot.slane %v1074, %v1100
    %v1102 = vlaneseq
    %v1103 = vshrl.u32 %v1102, 7
    %v1104 = vsub.s32 %v867, %v1103
    %v1105 = vrot.slane %v1075, %v1104
    %v1106 = vsel %vm872, %v1105, %v1101
    %v1107 = vsel %vm1027, %v1106, %v1097
    %v1108 = vsel %vm1052, %v1107, 0
    %v1111 = vsel %vm344, %v1077, 0
    %1113 = vmatprep.subr.mxu0 0.0
    %1114 = vmatpush1.msra.mxu0 0.0
    %1115 = vmatprep.subr.mxu0 0.0
    %1116 = vmatpush1.msra.mxu0 0.0
    %1117 = vmatprep.subr.mxu0 0.0
    %1118 = vmatpush1.msra.mxu0 0.0
    %1119 = vmatprep.subr.mxu0 0.0
    %1120 = vmatpush1.msra.mxu0 0.0
    %1121 = vmatprep.subr.mxu0 0.0
    %1122 = vmatpush1.msra.mxu0 0.0
    %1123 = vmatprep.subr.mxu0 0.0
    %1124 = vmatpush1.msra.mxu0 0.0
    %1125 = vmatprep.subr.mxu0 0.0
    %1126 = vmatpush1.msra.mxu0 0.0
    %1127 = vmatprep.subr.mxu0 0.0
    %1128 = vmatpush1.msra.mxu0 0.0
    %1129 = vmatprep.subr.mxu0 0.0
    %1130 = vmatpush1.msra.mxu0 0.0
    %1131 = vmatprep.subr.mxu0 0.0
    %1132 = vmatpush1.msra.mxu0 0.0
    %1133 = vmatprep.subr.mxu0 0.0
    %1134 = vmatpush1.msra.mxu0 0.0
    %1135 = vmatprep.subr.mxu0 0.0
    %1136 = vmatpush1.msra.mxu0 0.0
    %1137 = vmatprep.subr.mxu0 0.0
    %1138 = vmatpush1.msra.mxu0 0.0
    %1139 = vmatprep.subr.mxu0 0.0
    %1140 = vmatpush1.msra.mxu0 0.0
    %1141 = vmatprep.subr.mxu0 0.0
    %1142 = vmatpush1.msra.mxu0 %v1111
    %1143 = vmatprep.subr.mxu0 0.0
    %1144 = vmatpush1.msra.mxu0 %v1076
    %1145 = vmatprep.subr.mxu0 0.0
    %1146 = vmatpush2.msra.mxu0 0.0
    %1147 = vmatprep.subr.mxu0 0.0
    %1148 = vmatpush2.msra.mxu0 0.0
    %1149 = vmatprep.subr.mxu0 0.0
    %1150 = vmatpush2.msra.mxu0 0.0
    %1151 = vmatprep.subr.mxu0 0.0
    %1152 = vmatpush2.msra.mxu0 0.0
    %1153 = vmatprep.subr.mxu0 0.0
    %1154 = vmatpush2.msra.mxu0 0.0
    %1155 = vmatprep.subr.mxu0 0.0
    %1156 = vmatpush2.msra.mxu0 0.0
    %1157 = vmatprep.subr.mxu0 0.0
    %1158 = vmatpush2.msra.mxu0 0.0
    %1159 = vmatprep.subr.mxu0 0.0
    %1160 = vmatpush2.msra.mxu0 0.0
    %1161 = vmatprep.subr.mxu0 0.0
    %1162 = vmatpush2.msra.mxu0 0.0
    %1163 = vmatprep.subr.mxu0 0.0
    %1164 = vmatpush2.msra.mxu0 0.0
    %1165 = vmatprep.subr.mxu0 0.0
    %1166 = vmatpush2.msra.mxu0 0.0
    %1167 = vmatprep.subr.mxu0 0.0
    %1168 = vmatpush2.msra.mxu0 0.0
    %1169 = vmatprep.subr.mxu0 0.0
    %1170 = vmatpush2.msra.mxu0 0.0
    %1171 = vmatprep.subr.mxu0 0.0
    %1172 = vmatpush2.msra.mxu0 0.0
    %1173 = vmatprep.subr.mxu0 0.0
    %1174 = vmatpush2.msra.mxu0 0.0
    %1175 = vmatprep.subr.mxu0 0.0
    %1176 = vmatpush2.msra.mxu0 0.0
    %1177 = vmatprep.mubr.f32.mxu0 0.0
    %1178 = vmatmul.mubr.f32.gmra.mxu0 %v1108
    %v1179 = vpop.f32.mrf.mxu0
    %v1180 = vadd.f32 %v1083, %v1179
    %v1181 = vpop.f32.mrf.mxu0
    %1182 = vdwg.mxu0
    %vm1183 = vcmask 25600
    %v1184 = vsel %vm1183, %v1180, -inf
    %1185 = vmax.xlane.f32.xlu0 %v1184
    %v1186 = vpop.xlane.xlu0 %1185
    %v1187 = vsub.f32 %v1180, %v1186
    %v1188 = vmul.f32 %v1187, 1.442695
    %v1189 = vpow.pop %v1188
    %v1190 = vsel %vm1183, %v1189, 0.0
    %1191 = vadd.xlane.f32.xlu0 %v1190
    %v1192 = vpop.xlane.xlu0 %1191
    %v1193 = vrcp.pop %v1192
    %v1194 = vmul.f32 %v1189, %v1193
    %1195 = vst.msk [vmem:[#allocation4] sm:$0x3] %vm1183, %v1194
    // Predicated region
    $region30: #{dqn_forward.3} parent=1 // pred_check
      _
    $region31: #{dqn_forward.3} parent=1 // pred_check_branch
      %1197 = sbr.rel (0) target = $region33
    $region32: #{dqn_forward.3} parent=1 // pred_region
      %s1199 = ssub.s32 32, 32
      %1200 = vsyncadd [#allocation5], %s1199
      %s1202 = sshll.u32 [#allocation4], 4
      %s1203 = int_to_ptr.vmem [resolvable:$true] %s1202
      %1205 = dma.vmem_to_hbm [thread:$0]  %s1203, 32, %s7, [#allocation5]
    $region33: #{dqn_forward.3} parent=1 // pred_fallthru
      _
    // Predicated region
    $region34: #{dqn_forward.3} parent=1 // pred_check
      _
    $region35: #{dqn_forward.3} parent=1 // pred_check_branch
      %1207 = sbr.rel (0) target = $region37
    $region36: #{dqn_forward.3} parent=1 // pred_region
      %1208 = dma.done [#allocation5], 32
    $region37: #{dqn_forward.3} parent=1 // pred_fallthru
      _
    %1209 = vsyncpa [#allocation5], 1

</llo_original>
